<compile_context>
chip_gen: v5e
topology: v5e:2x2
jax: 0.10.0
libtpu: 0.0.40
codegen_flags: <defaults>
</compile_context>

<pallas_src>
import functools

import numpy as np

import jax
import jax.numpy as jnp
from jax.experimental import pallas as pl
from jax.experimental.pallas import tpu as pltpu


def _basic_block_kernel(x_ref, w1_ref, b1_ref, w2_ref, b2_ref, o_ref, *,
                        H, compute_dtype):
    """Fused conv1+bn1+relu -> conv2+bn2 -> +residual -> relu for B_img images.

    x_ref  : (M, W*C)    bf16  activation rows, lane-packed (w, c), M=B_img*H
    w*_ref : (3*W*C, W*C) bf16 block-Toeplitz conv weights, BN scale folded in
    b*_ref : (1, W*C)    f32   folded BN bias, tiled over w
    o_ref  : (M, W*C)    f32   output rows, lane-packed (w, c)
    """
    M, WC = x_ref.shape
    x = x_ref[...].astype(jnp.float32)                      # upcast once

    # Per-image H-boundary masks: row m is image row h = m % H.  The
    # "row above" slab is invalid on each image's first row, the "row below"
    # slab on its last row (this is the conv's zero padding in H).
    h_idx = jax.lax.broadcasted_iota(jnp.int32, (M, WC), 0) % H
    not_first = h_idx != 0
    not_last = h_idx != (H - 1)

    zrow = jnp.zeros((1, WC), jnp.float32)

    def conv_bn(inp, w_ref, b_ref):
        # 3x3 conv + folded-BN affine as ONE aligned MXU matmul.
        #   lhs = [row_above | row | row_below]  (M, 3*WC), 128-aligned slabs
        #   rhs = block-Toeplitz weight (3*WC, WC) with BN scale folded in.
        above = jnp.where(not_first,
                          jnp.concatenate([zrow, inp[:-1]], axis=0), 0.0)
        below = jnp.where(not_last,
                          jnp.concatenate([inp[1:], zrow], axis=0), 0.0)
        lhs = jnp.concatenate([above, inp, below], axis=1).astype(compute_dtype)
        acc = jnp.dot(lhs, w_ref[...],
                      preferred_element_type=jnp.float32)    # (M, WC) f32
        return acc + b_ref[...]

    h1 = jnp.maximum(conv_bn(x, w1_ref, b1_ref), 0.0)        # conv1+bn1+relu
    h2 = conv_bn(h1, w2_ref, b2_ref)                         # conv2+bn2
    o_ref[...] = jnp.maximum(h2 + x, 0.0).astype(o_ref.dtype)  # +res, relu


def _toeplitz_conv_weight(w_hwio, W, scale):
    """Fold (3,3,Cin,Cout) HWIO kernel + BN scale into a (3*W*Cin, W*Cout) matrix.

    B[(kh*W + wi)*Cin + ci, wo*Cout + co] = scale[co] * w[kh, wi-wo+1, ci, co]
    when wi-wo+1 in {0,1,2}, else 0.  Width borders are implicitly zero-padded
    (SAME conv) because out-of-range taps simply never appear in B.
    """
    KH, KW, Cin, Cout = w_hwio.shape
    sel = np.zeros((KW, W, W), np.float32)                   # sel[kw, wi, wo]
    for kw in range(KW):
        for wo in range(W):
            wi = wo + kw - (KW // 2)
            if 0 <= wi < W:
                sel[kw, wi, wo] = 1.0
    w = w_hwio.astype(jnp.float32) * scale.astype(jnp.float32)[None, None, None, :]
    b = jnp.einsum("kiw,hkco->hicwo", jnp.asarray(sel), w)   # (kh,wi,ci,wo,co)
    return b.reshape(KH * W * Cin, W * Cout)


def basic_block_forward(x_nchw, w1, s1, b1, w2, s2, b2, *,
                        block_images=8, compute_dtype=jnp.bfloat16):
    """BasicBlock forward (stride=1, downsample=None). Input/output NCHW f32."""
    N, C, H, W = x_nchw.shape
    Cm = w1.shape[-1]
    assert w1.shape == (3, 3, C, Cm) and w2.shape == (3, 3, Cm, Cm)
    assert Cm == C, "stride=1 / downsample=None requires inplanes == planes"

    WC = W * C
    assert WC % 128 == 0, "lane-dense layout needs W*C to be a multiple of 128"

    # Pick the image block: M = B_img*H rows per MXU matmul.  8 images
    # (M=128) saturates v5e's MXU rows; use 16 (M=256) on v6e/v7x.
    B_img = max(1, min(block_images, N))
    while N % B_img:
        B_img -= 1
    M = B_img * H
    assert M % 8 == 0

    # NCHW -> lane-packed rows (N*H, W*C), shipped as bf16 (halves DMA bytes;
    # the MXU operands are bf16 anyway; all math stays f32 in-kernel).
    x_rows = jnp.transpose(x_nchw, (0, 2, 3, 1)).reshape(N * H, WC)
    x_rows = x_rows.astype(compute_dtype)

    # BN scale folded into the conv weights (wrapper-side, once); bias stays f32.
    w1t = _toeplitz_conv_weight(w1, W, s1).astype(compute_dtype)   # (3*WC, WC)
    w2t = _toeplitz_conv_weight(w2, W, s2).astype(compute_dtype)
    b1t = jnp.tile(b1.astype(jnp.float32), W).reshape(1, WC)
    b2t = jnp.tile(b2.astype(jnp.float32), W).reshape(1, WC)

    kernel = functools.partial(_basic_block_kernel, H=H,
                               compute_dtype=compute_dtype)

    KROWS = 3 * WC
    out_rows = pl.pallas_call(
        kernel,
        out_shape=jax.ShapeDtypeStruct((N * H, WC), jnp.float32),
        grid=(N // B_img,),
        in_specs=[
            pl.BlockSpec((M, WC), lambda i: (i, 0)),       # activation rows
            pl.BlockSpec((KROWS, WC), lambda i: (0, 0)),   # conv1 (scale-folded)
            pl.BlockSpec((1, WC), lambda i: (0, 0)),       # bn1 bias
            pl.BlockSpec((KROWS, WC), lambda i: (0, 0)),   # conv2 (scale-folded)
            pl.BlockSpec((1, WC), lambda i: (0, 0)),       # bn2 bias
        ],
        out_specs=pl.BlockSpec((M, WC), lambda i: (i, 0)),
        compiler_params=pltpu.CompilerParams(
            dimension_semantics=("parallel",)),
    )(x_rows, w1t, b1t, w2t, b2t)

    return jnp.transpose(out_rows.reshape(N, H, W, C), (0, 3, 1, 2))


def _ref_forward(x_nchw, w1, s1, b1, w2, s2, b2, compute_dtype=jnp.bfloat16):
    """Plain-JAX reference in module order: conv -> BN affine (f32) -> ReLU, ...

    Activations are round-tripped through the compute dtype to model the
    kernel's bf16 activation transport; convolutions accumulate in f32.
    """
    x = jnp.transpose(x_nchw, (0, 2, 3, 1))
    x = x.astype(compute_dtype).astype(jnp.float32)

    def conv(inp, w):
        return jax.lax.conv_general_dilated(
            inp.astype(compute_dtype), w.astype(compute_dtype),
            window_strides=(1, 1), padding="SAME",
            dimension_numbers=("NHWC", "HWIO", "NHWC"),
            preferred_element_type=jnp.float32)

    out = jnp.maximum(conv(x, w1) * s1 + b1, 0.0)
    out = conv(out, w2) * s2 + b2
    out = jnp.maximum(out + x, 0.0)
    return jnp.transpose(out, (0, 3, 1, 2))


if __name__ == "__main__":
    key = jax.random.PRNGKey(0)
    ks = jax.random.split(key, 12)

    # C=8, W=16 -> lane-packed last dim W*C = 128 (one full lane tile).
    # N=16 with block_images=8 -> M = 128 rows per MXU matmul and a grid of
    # 2 parallel steps (megacore-shardable, pipelined).
    N, C, H, W = 16, 8, 16, 16
    planes = C
    eps = 1e-5

    x = jax.random.normal(ks[0], (N, C, H, W), jnp.float32)

    # Conv weights generated directly in HWIO layout (synthetic init).
    w1 = 0.1 * jax.random.normal(ks[1], (3, 3, C, planes), jnp.float32)
    w2 = 0.1 * jax.random.normal(ks[2], (3, 3, planes, planes), jnp.float32)

    # BN1 params folded to affine (eval-mode semantics).
    g1 = 1.0 + 0.1 * jax.random.normal(ks[3], (planes,), jnp.float32)
    be1 = 0.1 * jax.random.normal(ks[4], (planes,), jnp.float32)
    m1 = 0.1 * jax.random.normal(ks[5], (planes,), jnp.float32)
    v1 = jnp.abs(jax.random.normal(ks[6], (planes,), jnp.float32)) + 0.5
    s1 = g1 / jnp.sqrt(v1 + eps)
    b1 = be1 - m1 * s1

    # BN2 params.
    g2 = 1.0 + 0.1 * jax.random.normal(ks[7], (planes,), jnp.float32)
    be2 = 0.1 * jax.random.normal(ks[8], (planes,), jnp.float32)
    m2 = 0.1 * jax.random.normal(ks[9], (planes,), jnp.float32)
    v2 = jnp.abs(jax.random.normal(ks[10], (planes,), jnp.float32)) + 0.5
    s2 = g2 / jnp.sqrt(v2 + eps)
    b2 = be2 - m2 * s2

    out = basic_block_forward(x, w1, s1, b1, w2, s2, b2, block_images=8)
    out = jax.block_until_ready(out)

    ref = _ref_forward(x, w1, s1, b1, w2, s2, b2)
    assert out.shape == (N, C, H, W)
    max_err = float(jnp.max(jnp.abs(out - ref)))
    # Tolerance covers bf16 operand rounding + BN-scale folded into bf16 weights.
    assert jnp.allclose(out, ref, atol=2e-2, rtol=2e-2), (
        f"mismatch vs reference (max abs err {max_err})")

    print("KERNEL_OK")
</pallas_src>

<mosaic_0001>
module attributes {stable_mosaic.version = 11 : i64} {
  func.func @_basic_block_kernel(%arg0: i32, %arg1: memref<128x128xbf16, #tpu.memory_space<vmem>>, %arg2: memref<384x128xbf16, #tpu.memory_space<vmem>>, %arg3: memref<1x128xf32, #tpu.memory_space<vmem>>, %arg4: memref<384x128xbf16, #tpu.memory_space<vmem>>, %arg5: memref<1x128xf32, #tpu.memory_space<vmem>>, %arg6: memref<128x128xf32, #tpu.memory_space<vmem>>) attributes {dimension_semantics = [#tpu.dimension_semantics<parallel>], iteration_bounds = array<i64: 2>, scalar_prefetch = 0 : i64, scratch_operands = 0 : i64, tpu.core_type = #tpu.core_type<tc>, window_params = [{transform_indices = @transform_0, window_bounds = array<i64: 128, 128>}, {pipeline_mode = #tpu.pipeline_mode<synchronous>, transform_indices = @transform_1, window_bounds = array<i64: 384, 128>}, {pipeline_mode = #tpu.pipeline_mode<synchronous>, transform_indices = @transform_2, window_bounds = array<i64: 1, 128>}, {pipeline_mode = #tpu.pipeline_mode<synchronous>, transform_indices = @transform_3, window_bounds = array<i64: 384, 128>}, {pipeline_mode = #tpu.pipeline_mode<synchronous>, transform_indices = @transform_4, window_bounds = array<i64: 1, 128>}, {transform_indices = @transform_5, window_bounds = array<i64: 128, 128>}]} {
    %c0 = arith.constant 0 : index
    %c0_0 = arith.constant 0 : index
    %0 = vector.load %arg1[%c0, %c0_0] : memref<128x128xbf16, #tpu.memory_space<vmem>>, vector<128x128xbf16>
    %1 = arith.extf %0 : vector<128x128xbf16> to vector<128x128xf32>
    %2 = tpu.iota {dimensions = array<i32: 0>} : vector<128x128xi32>
    %c16_i32 = arith.constant 16 : i32
    %c0_i32 = arith.constant 0 : i32
    %3 = arith.cmpi eq, %c16_i32, %c0_i32 : i32
    %c1_i32 = arith.constant 1 : i32
    %4 = arith.select %3, %c1_i32, %c16_i32 : i32
    %5 = vector.broadcast %4 : i32 to vector<128x128xi32>
    %6 = arith.remsi %2, %5 : vector<128x128xi32>
    %c0_i32_1 = arith.constant 0 : i32
    %7 = vector.broadcast %c0_i32_1 : i32 to vector<128x128xi32>
    %8 = arith.cmpi ne, %6, %7 : vector<128x128xi32>
    %c0_i32_2 = arith.constant 0 : i32
    %9 = vector.broadcast %c0_i32_2 : i32 to vector<128x128xi32>
    %10 = arith.cmpi slt, %6, %9 : vector<128x128xi32>
    %c0_i32_3 = arith.constant 0 : i32
    %11 = arith.cmpi slt, %4, %c0_i32_3 : i32
    %12 = vector.broadcast %11 : i1 to vector<128x128xi1>
    %13 = vector.broadcast %12 : vector<128x128xi1> to vector<128x128xi1>
    %14 = arith.xori %10, %13 : vector<128x128xi1>
    %15 = arith.andi %14, %8 : vector<128x128xi1>
    %16 = vector.broadcast %4 : i32 to vector<128x128xi32>
    %17 = arith.addi %6, %16 : vector<128x128xi32>
    %18 = arith.select %15, %17, %6 : vector<128x128xi1>, vector<128x128xi32>
    %c0_i32_4 = arith.constant 0 : i32
    %19 = vector.broadcast %c0_i32_4 : i32 to vector<128x128xi32>
    %20 = arith.cmpi ne, %18, %19 : vector<128x128xi32>
    %c15_i32 = arith.constant 15 : i32
    %21 = vector.broadcast %c15_i32 : i32 to vector<128x128xi32>
    %22 = arith.cmpi ne, %18, %21 : vector<128x128xi32>
    %cst = arith.constant 0.000000e+00 : f32
    %23 = vector.broadcast %cst : f32 to vector<1x128xf32>
    %24 = vector.extract_strided_slice %1 {offsets = [0, 0], sizes = [127, 128], strides = [1, 1]} : vector<128x128xf32> to vector<127x128xf32>
    %25 = tpu.concatenate %23, %24 in 0 : vector<1x128xf32>, vector<127x128xf32> -> vector<128x128xf32>
    %cst_5 = arith.constant 0.000000e+00 : f32
    %26 = vector.broadcast %cst_5 : f32 to vector<128x128xf32>
    %27 = arith.select %20, %25, %26 : vector<128x128xi1>, vector<128x128xf32>
    %28 = vector.extract_strided_slice %1 {offsets = [1, 0], sizes = [127, 128], strides = [1, 1]} : vector<128x128xf32> to vector<127x128xf32>
    %29 = tpu.concatenate %28, %23 in 0 : vector<127x128xf32>, vector<1x128xf32> -> vector<128x128xf32>
    %cst_6 = arith.constant 0.000000e+00 : f32
    %30 = vector.broadcast %cst_6 : f32 to vector<128x128xf32>
    %31 = arith.select %22, %29, %30 : vector<128x128xi1>, vector<128x128xf32>
    %32 = tpu.concatenate %27, %1, %31 in 1 : vector<128x128xf32>, vector<128x128xf32>, vector<128x128xf32> -> vector<128x384xf32>
    %33 = arith.truncf %32 : vector<128x384xf32> to vector<128x384xbf16>
    %c0_7 = arith.constant 0 : index
    %c0_8 = arith.constant 0 : index
    %34 = vector.load %arg2[%c0_7, %c0_8] : memref<384x128xbf16, #tpu.memory_space<vmem>>, vector<384x128xbf16>
    %cst_9 = arith.constant dense<0.000000e+00> : vector<128x128xf32>
    %35 = tpu.matmul %33, %34, %cst_9 {dimension_numbers = #tpu.dot_dimension_numbers<[1], [0], [0], [1], [0, 0, 1, 1], [], []>} : vector<128x384xbf16>, vector<384x128xbf16>, vector<128x128xf32> -> vector<128x128xf32>
    %c0_10 = arith.constant 0 : index
    %c0_11 = arith.constant 0 : index
    %36 = vector.load %arg3[%c0_10, %c0_11] : memref<1x128xf32, #tpu.memory_space<vmem>>, vector<1x128xf32>
    %37 = vector.broadcast %36 : vector<1x128xf32> to vector<128x128xf32>
    %38 = arith.addf %35, %37 : vector<128x128xf32>
    %cst_12 = arith.constant 0.000000e+00 : f32
    %39 = vector.broadcast %cst_12 : f32 to vector<128x128xf32>
    %40 = arith.maximumf %38, %39 : vector<128x128xf32>
    %41 = vector.extract_strided_slice %40 {offsets = [0, 0], sizes = [127, 128], strides = [1, 1]} : vector<128x128xf32> to vector<127x128xf32>
    %42 = tpu.concatenate %23, %41 in 0 : vector<1x128xf32>, vector<127x128xf32> -> vector<128x128xf32>
    %cst_13 = arith.constant 0.000000e+00 : f32
    %43 = vector.broadcast %cst_13 : f32 to vector<128x128xf32>
    %44 = arith.select %20, %42, %43 : vector<128x128xi1>, vector<128x128xf32>
    %45 = vector.extract_strided_slice %40 {offsets = [1, 0], sizes = [127, 128], strides = [1, 1]} : vector<128x128xf32> to vector<127x128xf32>
    %46 = tpu.concatenate %45, %23 in 0 : vector<127x128xf32>, vector<1x128xf32> -> vector<128x128xf32>
    %cst_14 = arith.constant 0.000000e+00 : f32
    %47 = vector.broadcast %cst_14 : f32 to vector<128x128xf32>
    %48 = arith.select %22, %46, %47 : vector<128x128xi1>, vector<128x128xf32>
    %49 = tpu.concatenate %44, %40, %48 in 1 : vector<128x128xf32>, vector<128x128xf32>, vector<128x128xf32> -> vector<128x384xf32>
    %50 = arith.truncf %49 : vector<128x384xf32> to vector<128x384xbf16>
    %c0_15 = arith.constant 0 : index
    %c0_16 = arith.constant 0 : index
    %51 = vector.load %arg4[%c0_15, %c0_16] : memref<384x128xbf16, #tpu.memory_space<vmem>>, vector<384x128xbf16>
    %cst_17 = arith.constant dense<0.000000e+00> : vector<128x128xf32>
    %52 = tpu.matmul %50, %51, %cst_17 {dimension_numbers = #tpu.dot_dimension_numbers<[1], [0], [0], [1], [0, 0, 1, 1], [], []>} : vector<128x384xbf16>, vector<384x128xbf16>, vector<128x128xf32> -> vector<128x128xf32>
    %c0_18 = arith.constant 0 : index
    %c0_19 = arith.constant 0 : index
    %53 = vector.load %arg5[%c0_18, %c0_19] : memref<1x128xf32, #tpu.memory_space<vmem>>, vector<1x128xf32>
    %54 = vector.broadcast %53 : vector<1x128xf32> to vector<128x128xf32>
    %55 = arith.addf %52, %54 : vector<128x128xf32>
    %56 = arith.addf %55, %1 : vector<128x128xf32>
    %cst_20 = arith.constant 0.000000e+00 : f32
    %57 = vector.broadcast %cst_20 : f32 to vector<128x128xf32>
    %58 = arith.maximumf %56, %57 : vector<128x128xf32>
    %c0_21 = arith.constant 0 : index
    %c0_22 = arith.constant 0 : index
    %59 = vector.load %arg6[%c0_21, %c0_22] : memref<128x128xf32, #tpu.memory_space<vmem>>, vector<128x128xf32>
    tpu.vector_store %arg6[%c0_21, %c0_22], %58 {strides = array<i32>} : memref<128x128xf32, #tpu.memory_space<vmem>>, vector<128x128xf32>,
    return
  }
  func.func @transform_0(%arg0: i32) -> (i32, i32) {
    %c0_i32 = arith.constant 0 : i32
    %c0_i32_0 = arith.constant 0 : i32
    return %arg0, %c0_i32 : i32, i32
  }
  func.func @transform_1(%arg0: i32) -> (i32, i32) {
    %c0_i32 = arith.constant 0 : i32
    %c0_i32_0 = arith.constant 0 : i32
    %c0_i32_1 = arith.constant 0 : i32
    return %c0_i32, %c0_i32_0 : i32, i32
  }
  func.func @transform_2(%arg0: i32) -> (i32, i32) {
    %c0_i32 = arith.constant 0 : i32
    %c0_i32_0 = arith.constant 0 : i32
    %c0_i32_1 = arith.constant 0 : i32
    return %c0_i32, %c0_i32_0 : i32, i32
  }
  func.func @transform_3(%arg0: i32) -> (i32, i32) {
    %c0_i32 = arith.constant 0 : i32
    %c0_i32_0 = arith.constant 0 : i32
    %c0_i32_1 = arith.constant 0 : i32
    return %c0_i32, %c0_i32_0 : i32, i32
  }
  func.func @transform_4(%arg0: i32) -> (i32, i32) {
    %c0_i32 = arith.constant 0 : i32
    %c0_i32_0 = arith.constant 0 : i32
    %c0_i32_1 = arith.constant 0 : i32
    return %c0_i32, %c0_i32_0 : i32, i32
  }
  func.func @transform_5(%arg0: i32) -> (i32, i32) {
    %c0_i32 = arith.constant 0 : i32
    %c0_i32_0 = arith.constant 0 : i32
    return %arg0, %c0_i32 : i32, i32
  }
}

</mosaic_0001>

<llo_original>
// kernel: tpu_custom_call.1
$region0: #{tpu_custom_call.1}
  #allocation0 [shape = 'u32[]', space=smem, size = 0x4, offset = 0x4, fixed_abs, tag = 'smem constant byte address 0x4 - core index']
  #allocation1 [shape = 'u32[72,128]{1,0:T(1,128)}', space=vmem, size = 0x9000, scoped, tag = 'internal scratch']
  %s0 = inlined_call_operand.hbm [shape: bf16[256,128], index: 0, kind: input, shape index: {}]
  %s1 = inlined_call_operand.hbm [shape: bf16[384,128], index: 1, kind: input, shape index: {}]
  %s2 = inlined_call_operand.vmem [shape: f32[1,128], index: 2, kind: input, shape index: {}]
  %s3 = inlined_call_operand.hbm [shape: bf16[384,128], index: 3, kind: input, shape index: {}]
  %s4 = inlined_call_operand.vmem [shape: f32[1,128], index: 4, kind: input, shape index: {}]
  %s5 = inlined_call_operand.hbm [shape: f32[256,128], index: 5, kind: output, shape index: {}]
  %s6 = sld [smem:[#allocation0]]
  $region65: #{tpu_custom_call.1} parent=0
    _
  %s8 = ssub.s32 1, %s6
  %s9 = scalar_select 0, %s8, %s6
  $region1: #{tpu_custom_call.1} parent=0
    #allocation2 [shape = 'u8[65536]{0}', space=vmem, size = 0x10000, scoped, tag = 'input window, operand 0']
    #allocation3 [shape = 's32[2]{0}', space=sflag, size = 0x8, scoped, tag = 'scoped memory for tpu_custom_call.1']
    #allocation4 [shape = 's32[2]{0}', space=sflag, size = 0x8, scoped, tag = 'scoped memory for tpu_custom_call.1']
    #allocation5 [shape = 'u8[98304]{0}', space=vmem, size = 0x18000, scoped, tag = 'input window, operand 1, single buffered']
    #allocation6 [shape = 's32[1]{0}', space=sflag, size = 0x4, scoped, tag = 'scoped memory for tpu_custom_call.1']
    #allocation7 [shape = 'u8[98304]{0}', space=vmem, size = 0x18000, scoped, tag = 'input window, operand 3, single buffered']
    #allocation8 [shape = 'u8[131072]{0}', space=vmem, size = 0x20000, scoped, tag = 'output window, operand 0']
    %10 = vsyncpa [#allocation3], 0
    %s11 = scalar_lea.sflag [#allocation3], 1
    %12 = vsyncpa %s11, 0
    %13 = vsyncpa [#allocation6], 0
    %14 = vsyncpa [#allocation4], 0
    %s15 = scalar_lea.sflag [#allocation4], 1
    %16 = vsyncpa %s15, 0
    loop: start=0, step=1, limit=4
    $region2: #{tpu_custom_call.1} parent=1 // loop_pre_header
      _
    $region3: #{tpu_custom_call.1} parent=1 // loop_header
      %s18 = sphi 0, %s22
      %p19 = scmp.ge.s32.totalorder %s18, 4
      %s28 = sphi 0, %s30
      %s31 = sphi 0, %s28
      %s32 = sphi 0, %s31
      %s48 = sphi 0, %s32
      %s52 = sphi 0, %s52
      %s54 = sphi 0, %s52
      %s55 = sphi 0, %s54
      %s69 = sphi 0, %s55
      %s73 = sphi 0, %s73
      %s75 = sphi 0, %s73
      %s76 = sphi 0, %s75
      %s90 = sphi 0, %s76
      %s94 = sphi 0, %s94
      %s96 = sphi 0, %s94
      %s97 = sphi 0, %s96
      %s111 = sphi 0, %s97
      %s115 = sphi 0, %s115
      %s117 = sphi 0, %s115
      %s118 = sphi 0, %s117
      %s132 = sphi 0, %s118
      %s138 = sphi 0, %s140
      %s141 = sphi 0, %s138
      %s142 = sphi 0, %s141
      %s158 = sphi 0, %s142
    $region4: #{tpu_custom_call.1} parent=1 // loop_header_branch
      %21 = sbr.rel (%p19) target = $region8
    $region5: #{tpu_custom_call.1} parent=1 // loop_body
      %s23 = ssub.s32 %s18, 1
      %s24 = ssub.s32 %s18, 2
      %s25 = sadd.s32 %s18, 1
      %s26 = ssub.s32 %s18, %s25
      %p27 = scmp.eq.s32.totalorder %s26, 0
      %s29 = sadd.s32 %s28, 1
      %s30 = scalar_select %p27, %s28, %s29
      %p33 = pneg %p27
      %p34 = scmp.eq.s32.totalorder %s18, 1
      %p35 = por %p33, %p34
      %p36 = scmp.ne.s32.totalorder %s28, %s31
      %p37 = scmp.eq.s32.totalorder %s18, 0
      %p38 = por %p36, %p37
      %p39 = scmp.ne.s32.totalorder %s28, %s31
      %p40 = scmp.eq.s32.totalorder %s23, 1
      %p41 = por %p39, %p40
      %p42 = scmp.ne.s32.totalorder %s31, %s32
      %p43 = scmp.eq.s32.totalorder %s23, 0
      %p44 = por %p42, %p43
      %p45 = scmp.ne.s32.totalorder %s31, %s32
      %p46 = scmp.eq.s32.totalorder %s24, 1
      %p47 = por %p45, %p46
      %p49 = scmp.ne.s32.totalorder %s32, %s48
      %p50 = scmp.eq.s32.totalorder %s24, 0
      %p51 = por %p49, %p50
      %s53 = sadd.s32 %s52, 1
      %p56 = scmp.eq.s32.totalorder %s18, 1
      %p57 = scmp.ne.s32.totalorder %s52, %s54
      %p58 = scmp.eq.s32.totalorder %s18, 0
      %p59 = por %p57, %p58
      %p60 = scmp.ne.s32.totalorder %s52, %s54
      %p61 = scmp.eq.s32.totalorder %s23, 1
      %p62 = por %p60, %p61
      %p63 = scmp.ne.s32.totalorder %s54, %s55
      %p64 = scmp.eq.s32.totalorder %s23, 0
      %p65 = por %p63, %p64
      %p66 = scmp.ne.s32.totalorder %s54, %s55
      %p67 = scmp.eq.s32.totalorder %s24, 1
      %p68 = por %p66, %p67
      %p70 = scmp.ne.s32.totalorder %s55, %s69
      %p71 = scmp.eq.s32.totalorder %s24, 0
      %p72 = por %p70, %p71
      %s74 = sadd.s32 %s73, 1
      %p77 = scmp.eq.s32.totalorder %s18, 1
      %p78 = scmp.ne.s32.totalorder %s73, %s75
      %p79 = scmp.eq.s32.totalorder %s18, 0
      %p80 = por %p78, %p79
      %p81 = scmp.ne.s32.totalorder %s73, %s75
      %p82 = scmp.eq.s32.totalorder %s23, 1
      %p83 = por %p81, %p82
      %p84 = scmp.ne.s32.totalorder %s75, %s76
      %p85 = scmp.eq.s32.totalorder %s23, 0
      %p86 = por %p84, %p85
      %p87 = scmp.ne.s32.totalorder %s75, %s76
      %p88 = scmp.eq.s32.totalorder %s24, 1
      %p89 = por %p87, %p88
      %p91 = scmp.ne.s32.totalorder %s76, %s90
      %p92 = scmp.eq.s32.totalorder %s24, 0
      %p93 = por %p91, %p92
      %s95 = sadd.s32 %s94, 1
      %p98 = scmp.eq.s32.totalorder %s18, 1
      %p99 = scmp.ne.s32.totalorder %s94, %s96
      %p100 = scmp.eq.s32.totalorder %s18, 0
      %p101 = por %p99, %p100
      %p102 = scmp.ne.s32.totalorder %s94, %s96
      %p103 = scmp.eq.s32.totalorder %s23, 1
      %p104 = por %p102, %p103
      %p105 = scmp.ne.s32.totalorder %s96, %s97
      %p106 = scmp.eq.s32.totalorder %s23, 0
      %p107 = por %p105, %p106
      %p108 = scmp.ne.s32.totalorder %s96, %s97
      %p109 = scmp.eq.s32.totalorder %s24, 1
      %p110 = por %p108, %p109
      %p112 = scmp.ne.s32.totalorder %s97, %s111
      %p113 = scmp.eq.s32.totalorder %s24, 0
      %p114 = por %p112, %p113
      %s116 = sadd.s32 %s115, 1
      %p119 = scmp.eq.s32.totalorder %s18, 1
      %p120 = scmp.ne.s32.totalorder %s115, %s117
      %p121 = scmp.eq.s32.totalorder %s18, 0
      %p122 = por %p120, %p121
      %p123 = scmp.ne.s32.totalorder %s115, %s117
      %p124 = scmp.eq.s32.totalorder %s23, 1
      %p125 = por %p123, %p124
      %p126 = scmp.ne.s32.totalorder %s117, %s118
      %p127 = scmp.eq.s32.totalorder %s23, 0
      %p128 = por %p126, %p127
      %p129 = scmp.ne.s32.totalorder %s117, %s118
      %p130 = scmp.eq.s32.totalorder %s24, 1
      %p131 = por %p129, %p130
      %p133 = scmp.ne.s32.totalorder %s118, %s132
      %p134 = scmp.eq.s32.totalorder %s24, 0
      %p135 = por %p133, %p134
      %s136 = ssub.s32 %s18, %s25
      %p137 = scmp.eq.s32.totalorder %s136, 0
      %s139 = sadd.s32 %s138, 1
      %s140 = scalar_select %p137, %s138, %s139
      %p143 = pneg %p137
      %p144 = scmp.eq.s32.totalorder %s18, 1
      %p145 = por %p143, %p144
      %p146 = scmp.ne.s32.totalorder %s138, %s141
      %p147 = scmp.eq.s32.totalorder %s18, 0
      %p148 = por %p146, %p147
      %p149 = scmp.ne.s32.totalorder %s138, %s141
      %p150 = scmp.eq.s32.totalorder %s23, 1
      %p151 = por %p149, %p150
      %p152 = scmp.ne.s32.totalorder %s141, %s142
      %p153 = scmp.eq.s32.totalorder %s23, 0
      %p154 = por %p152, %p153
      %p155 = scmp.ne.s32.totalorder %s141, %s142
      %p156 = scmp.eq.s32.totalorder %s24, 1
      %p157 = por %p155, %p156
      %p159 = scmp.ne.s32.totalorder %s142, %s158
      %p160 = scmp.eq.s32.totalorder %s24, 0
      %p161 = por %p159, %p160
      %p162 = scmp.le.s32.totalorder 1, %s18
      %p163 = scmp.lt.s32.totalorder %s18, 3
      %p164 = pnand %p162, %p163
      %p165 = pneg %p164
      // Predicated region
      $region9: #{tpu_custom_call.1} parent=5 // pred_check
        _
      $region10: #{tpu_custom_call.1} parent=5 // pred_check_branch
        %167 = sbr.rel (%p164) target = $region12
      $region11: #{tpu_custom_call.1} parent=5 // pred_region
        %s168 = ssub.s32 %s18, 1
        // Predicated region
        $region13: #{tpu_custom_call.1} parent=11 // pred_check
          %p169 = pneg %p65
        $region14: #{tpu_custom_call.1} parent=11 // pred_check_branch
          %171 = sbr.rel (%p169) target = $region16
        $region15: #{tpu_custom_call.1} parent=11 // pred_region
          %173 = vsyncadd [#allocation6], 0
          %s174 = sshll.u32 %s1, 4
          %s175 = int_to_ptr.hbm [resolvable:$true] %s174
          %s176 = sshll.u32 [#allocation5], 4
          %s177 = int_to_ptr.vmem [resolvable:$true] %s176
          %182 = dma.hbm_to_vmem [thread:$0]  %s175, 3072, %s177, [#allocation6], 64, 64, 4
        $region16: #{tpu_custom_call.1} parent=11 // pred_fallthru
          _
        // Predicated region
        $region17: #{tpu_custom_call.1} parent=11 // pred_check
          %p183 = pneg %p86
        $region18: #{tpu_custom_call.1} parent=11 // pred_check_branch
          %185 = sbr.rel (%p183) target = $region20
        $region19: #{tpu_custom_call.1} parent=11 // pred_region
          _
        $region20: #{tpu_custom_call.1} parent=11 // pred_fallthru
          _
        // Predicated region
        $region21: #{tpu_custom_call.1} parent=11 // pred_check
          %p186 = pneg %p107
        $region22: #{tpu_custom_call.1} parent=11 // pred_check_branch
          %188 = sbr.rel (%p186) target = $region24
        $region23: #{tpu_custom_call.1} parent=11 // pred_region
          %190 = vsyncadd [#allocation6], 0
          %s191 = sshll.u32 %s3, 4
          %s192 = int_to_ptr.hbm [resolvable:$true] %s191
          %s193 = sshll.u32 [#allocation7], 4
          %s194 = int_to_ptr.vmem [resolvable:$true] %s193
          %199 = dma.hbm_to_vmem [thread:$0]  %s192, 3072, %s194, [#allocation6], 64, 64, 4
        $region24: #{tpu_custom_call.1} parent=11 // pred_fallthru
          _
        // Predicated region
        $region25: #{tpu_custom_call.1} parent=11 // pred_check
          %p200 = pneg %p128
        $region26: #{tpu_custom_call.1} parent=11 // pred_check_branch
          %202 = sbr.rel (%p200) target = $region28
        $region27: #{tpu_custom_call.1} parent=11 // pred_region
          _
        $region28: #{tpu_custom_call.1} parent=11 // pred_fallthru
          _
      $region12: #{tpu_custom_call.1} parent=5 // pred_fallthru
        _
      %p203 = scmp.lt.s32.totalorder %s18, 2
      // Predicated region
      $region29: #{tpu_custom_call.1} parent=5 // pred_check
        %p204 = pneg %p203
      $region30: #{tpu_custom_call.1} parent=5 // pred_check_branch
        %206 = sbr.rel (%p204) target = $region32
      $region31: #{tpu_custom_call.1} parent=5 // pred_region
        // Predicated region
        $region33: #{tpu_custom_call.1} parent=31 // pred_check
          %p207 = pneg %p38
        $region34: #{tpu_custom_call.1} parent=31 // pred_check_branch
          %209 = sbr.rel (%p207) target = $region36
        $region35: #{tpu_custom_call.1} parent=31 // pred_region
          %s210 = sand.u32 %s28, 1
          %s211 = scalar_lea.sflag [#allocation3], %s210
          %s212 = sand.u32 %s28, 1
          %s213 = smul.addr %s212, 64
          %s214 = scalar_lea.vmem [#allocation2], %s213
          %s215 = smul.u32 16, %s18
          %217 = vsyncadd %s211, 0
          %s218 = smul.addr %s215, 4
          %s219 = scalar_lea.hbm %s0, %s218
          %s220 = sshll.u32 %s219, 4
          %s221 = int_to_ptr.hbm [resolvable:$true] %s220
          %s222 = sshll.u32 %s214, 4
          %s223 = int_to_ptr.vmem [resolvable:$true] %s222
          %228 = dma.hbm_to_vmem [thread:$0]  %s221, 1024, %s223, %s211, 64, 64, 4
        $region36: #{tpu_custom_call.1} parent=31 // pred_fallthru
          _
      $region32: #{tpu_custom_call.1} parent=5 // pred_fallthru
        _
      %p229 = scmp.le.s32.totalorder 1, %s18
      %p230 = scmp.lt.s32.totalorder %s18, 3
      %p231 = pnand %p229, %p230
      %p232 = pneg %p231
      // Predicated region
      $region37: #{tpu_custom_call.1} parent=5 // pred_check
        _
      $region38: #{tpu_custom_call.1} parent=5 // pred_check_branch
        %234 = sbr.rel (%p231) target = $region40
      $region39: #{tpu_custom_call.1} parent=5 // pred_region
        %s235 = ssub.s32 %s18, 1
        %s236 = sand.u32 %s31, 1
        %s237 = scalar_lea.sflag [#allocation3], %s236
        %s238 = sand.u32 %s31, 1
        %s239 = smul.addr %s238, 64
        %s240 = scalar_lea.vmem [#allocation2], %s239
        // Predicated region
        $region41: #{tpu_custom_call.1} parent=39 // pred_check
          %p241 = pneg %p44
        $region42: #{tpu_custom_call.1} parent=39 // pred_check_branch
          %243 = sbr.rel (%p241) target = $region44
        $region43: #{tpu_custom_call.1} parent=39 // pred_region
          %245 = dma.done %s237, 1024
        $region44: #{tpu_custom_call.1} parent=39 // pred_fallthru
          _
        // Predicated region
        $region45: #{tpu_custom_call.1} parent=39 // pred_check
          %p246 = pneg %p65
        $region46: #{tpu_custom_call.1} parent=39 // pred_check_branch
          %248 = sbr.rel (%p246) target = $region48
        $region47: #{tpu_custom_call.1} parent=39 // pred_region
          %250 = dma.done [#allocation6], 3072
        $region48: #{tpu_custom_call.1} parent=39 // pred_fallthru
          _
        // Predicated region
        $region49: #{tpu_custom_call.1} parent=39 // pred_check
          %p251 = pneg %p107
        $region50: #{tpu_custom_call.1} parent=39 // pred_check_branch
          %253 = sbr.rel (%p251) target = $region52
        $region51: #{tpu_custom_call.1} parent=39 // pred_region
          %255 = dma.done [#allocation6], 3072
        $region52: #{tpu_custom_call.1} parent=39 // pred_fallthru
          _
        %s256 = sand.u32 %s31, 1
        %s257 = scalar_lea.sflag [#allocation3], %s256
        %s258 = sand.u32 %s31, 1
        %s259 = smul.addr %s258, 64
        %s260 = scalar_lea.vmem [#allocation2], %s259
        %p261 = pneg %p44
        %p262 = pneg %p41
        %p263 = pneg %p65
        %p264 = pneg %p62
        %p265 = pneg %p86
        %p266 = pneg %p83
        %p267 = pneg %p107
        %p268 = pneg %p104
        %p269 = pneg %p128
        %p270 = pneg %p125
        %p271 = pneg %p154
        %p272 = pneg %p151
        %s273 = sand.u32 %s141, 1
        %s274 = scalar_lea.sflag [#allocation4], %s273
        %s275 = sand.u32 %s141, 1
        %s276 = smul.addr %s275, 128
        %s277 = scalar_lea.vmem [#allocation8], %s276
        %s278 = smul.u32 16, %s23
        %s279 = smul.u32 16, %s23
        %v280 = vld [vmem:[%s240] sm:$0xf]
        %v281 = vld [vmem:[%s240 + $0x4] sm:$0xf]
        %v282 = vld [vmem:[%s240 + $0x8] sm:$0xf]
        %v283 = vld [vmem:[%s240 + $0xc] sm:$0xf]
        %v284 = vld [vmem:[%s240 + $0x10] sm:$0xf]
        %v285 = vld [vmem:[%s240 + $0x14] sm:$0xf]
        %v286 = vld [vmem:[%s240 + $0x18] sm:$0xf]
        %v287 = vld [vmem:[%s240 + $0x1c] sm:$0xf]
        %v288 = vld [vmem:[%s240 + $0x20] sm:$0xf]
        %v289 = vld [vmem:[%s240 + $0x24] sm:$0xf]
        %v290 = vld [vmem:[%s240 + $0x28] sm:$0xf]
        %v291 = vld [vmem:[%s240 + $0x2c] sm:$0xf]
        %v292 = vld [vmem:[%s240 + $0x30] sm:$0xf]
        %v293 = vld [vmem:[%s240 + $0x34] sm:$0xf]
        %v294 = vld [vmem:[%s240 + $0x38] sm:$0xf]
        %v295 = vld [vmem:[%s240 + $0x3c] sm:$0xf]
        %v296 = vunpack.c.l.bf16 %v280
        %v297 = vunpack.c.l.bf16 %v281
        %v298 = vunpack.c.l.bf16 %v282
        %v299 = vunpack.c.l.bf16 %v283
        %v300 = vunpack.c.l.bf16 %v284
        %v301 = vunpack.c.l.bf16 %v285
        %v302 = vunpack.c.l.bf16 %v286
        %v303 = vunpack.c.l.bf16 %v287
        %v304 = vunpack.c.l.bf16 %v288
        %v305 = vunpack.c.l.bf16 %v289
        %v306 = vunpack.c.l.bf16 %v290
        %v307 = vunpack.c.l.bf16 %v291
        %v308 = vunpack.c.l.bf16 %v292
        %v309 = vunpack.c.l.bf16 %v293
        %v310 = vunpack.c.l.bf16 %v294
        %v311 = vunpack.c.l.bf16 %v295
        %v312 = vlaneseq
        %v313 = vshrl.u32 %v312, 7
        %v314 = vadd.s32 %v313, 8
        %v315 = vadd.s32 %v313, 16
        %v316 = vadd.s32 %v313, 24
        %v317 = vadd.s32 %v313, 32
        %v318 = vadd.s32 %v313, 40
        %v319 = vadd.s32 %v313, 48
        %v320 = vadd.s32 %v313, 56
        %v321 = vadd.s32 %v313, 64
        %v322 = vadd.s32 %v313, 72
        %v323 = vadd.s32 %v313, 80
        %v324 = vadd.s32 %v313, 88
        %v325 = vadd.s32 %v313, 96
        %v326 = vadd.s32 %v313, 104
        %v327 = vadd.s32 %v313, 112
        %v328 = vadd.s32 %v313, 120
        %vm329 = vcmp.lt.s32.totalorder %v313, 0
        %v330 = vsub.s32 0, %v313
        %v331 = vsel %vm329, %v330, %v313
        %v332 = vshrl.u32 %v331, 4
        %v333 = vand.u32 %v331, 15
        %v334 = vsub.s32 0, %v333
        %v335 = vsel %vm329, %v334, %v333
        %vm336 = vcmp.lt.s32.totalorder %v314, 0
        %v337 = vsub.s32 0, %v314
        %v338 = vsel %vm336, %v337, %v314
        %v339 = vshrl.u32 %v338, 4
        %v340 = vand.u32 %v338, 15
        %v341 = vsub.s32 0, %v340
        %v342 = vsel %vm336, %v341, %v340
        %vm343 = vcmp.lt.s32.totalorder %v315, 0
        %v344 = vsub.s32 0, %v315
        %v345 = vsel %vm343, %v344, %v315
        %v346 = vshrl.u32 %v345, 4
        %v347 = vand.u32 %v345, 15
        %v348 = vsub.s32 0, %v347
        %v349 = vsel %vm343, %v348, %v347
        %vm350 = vcmp.lt.s32.totalorder %v316, 0
        %v351 = vsub.s32 0, %v316
        %v352 = vsel %vm350, %v351, %v316
        %v353 = vshrl.u32 %v352, 4
        %v354 = vand.u32 %v352, 15
        %v355 = vsub.s32 0, %v354
        %v356 = vsel %vm350, %v355, %v354
        %vm357 = vcmp.lt.s32.totalorder %v317, 0
        %v358 = vsub.s32 0, %v317
        %v359 = vsel %vm357, %v358, %v317
        %v360 = vshrl.u32 %v359, 4
        %v361 = vand.u32 %v359, 15
        %v362 = vsub.s32 0, %v361
        %v363 = vsel %vm357, %v362, %v361
        %vm364 = vcmp.lt.s32.totalorder %v318, 0
        %v365 = vsub.s32 0, %v318
        %v366 = vsel %vm364, %v365, %v318
        %v367 = vshrl.u32 %v366, 4
        %v368 = vand.u32 %v366, 15
        %v369 = vsub.s32 0, %v368
        %v370 = vsel %vm364, %v369, %v368
        %vm371 = vcmp.lt.s32.totalorder %v319, 0
        %v372 = vsub.s32 0, %v319
        %v373 = vsel %vm371, %v372, %v319
        %v374 = vshrl.u32 %v373, 4
        %v375 = vand.u32 %v373, 15
        %v376 = vsub.s32 0, %v375
        %v377 = vsel %vm371, %v376, %v375
        %vm378 = vcmp.lt.s32.totalorder %v320, 0
        %v379 = vsub.s32 0, %v320
        %v380 = vsel %vm378, %v379, %v320
        %v381 = vshrl.u32 %v380, 4
        %v382 = vand.u32 %v380, 15
        %v383 = vsub.s32 0, %v382
        %v384 = vsel %vm378, %v383, %v382
        %vm385 = vcmp.lt.s32.totalorder %v321, 0
        %v386 = vsub.s32 0, %v321
        %v387 = vsel %vm385, %v386, %v321
        %v388 = vshrl.u32 %v387, 4
        %v389 = vand.u32 %v387, 15
        %v390 = vsub.s32 0, %v389
        %v391 = vsel %vm385, %v390, %v389
        %vm392 = vcmp.lt.s32.totalorder %v322, 0
        %v393 = vsub.s32 0, %v322
        %v394 = vsel %vm392, %v393, %v322
        %v395 = vshrl.u32 %v394, 4
        %v396 = vand.u32 %v394, 15
        %v397 = vsub.s32 0, %v396
        %v398 = vsel %vm392, %v397, %v396
        %vm399 = vcmp.lt.s32.totalorder %v323, 0
        %v400 = vsub.s32 0, %v323
        %v401 = vsel %vm399, %v400, %v323
        %v402 = vshrl.u32 %v401, 4
        %v403 = vand.u32 %v401, 15
        %v404 = vsub.s32 0, %v403
        %v405 = vsel %vm399, %v404, %v403
        %vm406 = vcmp.lt.s32.totalorder %v324, 0
        %v407 = vsub.s32 0, %v324
        %v408 = vsel %vm406, %v407, %v324
        %v409 = vshrl.u32 %v408, 4
        %v410 = vand.u32 %v408, 15
        %v411 = vsub.s32 0, %v410
        %v412 = vsel %vm406, %v411, %v410
        %vm413 = vcmp.lt.s32.totalorder %v325, 0
        %v414 = vsub.s32 0, %v325
        %v415 = vsel %vm413, %v414, %v325
        %v416 = vshrl.u32 %v415, 4
        %v417 = vand.u32 %v415, 15
        %v418 = vsub.s32 0, %v417
        %v419 = vsel %vm413, %v418, %v417
        %vm420 = vcmp.lt.s32.totalorder %v326, 0
        %v421 = vsub.s32 0, %v326
        %v422 = vsel %vm420, %v421, %v326
        %v423 = vshrl.u32 %v422, 4
        %v424 = vand.u32 %v422, 15
        %v425 = vsub.s32 0, %v424
        %v426 = vsel %vm420, %v425, %v424
        %vm427 = vcmp.lt.s32.totalorder %v327, 0
        %v428 = vsub.s32 0, %v327
        %v429 = vsel %vm427, %v428, %v327
        %v430 = vshrl.u32 %v429, 4
        %v431 = vand.u32 %v429, 15
        %v432 = vsub.s32 0, %v431
        %v433 = vsel %vm427, %v432, %v431
        %vm434 = vcmp.lt.s32.totalorder %v328, 0
        %v435 = vsub.s32 0, %v328
        %v436 = vsel %vm434, %v435, %v328
        %v437 = vshrl.u32 %v436, 4
        %v438 = vand.u32 %v436, 15
        %v439 = vsub.s32 0, %v438
        %v440 = vsel %vm434, %v439, %v438
        %vm441 = vcmp.ne.s32.totalorder %v335, 0
        %vm442 = vcmp.ne.s32.totalorder %v342, 0
        %vm443 = vcmp.ne.s32.totalorder %v349, 0
        %vm444 = vcmp.ne.s32.totalorder %v356, 0
        %vm445 = vcmp.ne.s32.totalorder %v363, 0
        %vm446 = vcmp.ne.s32.totalorder %v370, 0
        %vm447 = vcmp.ne.s32.totalorder %v377, 0
        %vm448 = vcmp.ne.s32.totalorder %v384, 0
        %vm449 = vcmp.ne.s32.totalorder %v391, 0
        %vm450 = vcmp.ne.s32.totalorder %v398, 0
        %vm451 = vcmp.ne.s32.totalorder %v405, 0
        %vm452 = vcmp.ne.s32.totalorder %v412, 0
        %vm453 = vcmp.ne.s32.totalorder %v419, 0
        %vm454 = vcmp.ne.s32.totalorder %v426, 0
        %vm455 = vcmp.ne.s32.totalorder %v433, 0
        %vm456 = vcmp.ne.s32.totalorder %v440, 0
        %vm457 = vcmp.lt.s32.totalorder %v335, 0
        %vm458 = vcmp.lt.s32.totalorder %v342, 0
        %vm459 = vcmp.lt.s32.totalorder %v349, 0
        %vm460 = vcmp.lt.s32.totalorder %v356, 0
        %vm461 = vcmp.lt.s32.totalorder %v363, 0
        %vm462 = vcmp.lt.s32.totalorder %v370, 0
        %vm463 = vcmp.lt.s32.totalorder %v377, 0
        %vm464 = vcmp.lt.s32.totalorder %v384, 0
        %vm465 = vcmp.lt.s32.totalorder %v391, 0
        %vm466 = vcmp.lt.s32.totalorder %v398, 0
        %vm467 = vcmp.lt.s32.totalorder %v405, 0
        %vm468 = vcmp.lt.s32.totalorder %v412, 0
        %vm469 = vcmp.lt.s32.totalorder %v419, 0
        %vm470 = vcmp.lt.s32.totalorder %v426, 0
        %vm471 = vcmp.lt.s32.totalorder %v433, 0
        %vm472 = vcmp.lt.s32.totalorder %v440, 0
        %vm473 = vmand %vm457, %vm441
        %vm474 = vmand %vm458, %vm442
        %vm475 = vmand %vm459, %vm443
        %vm476 = vmand %vm460, %vm444
        %vm477 = vmand %vm461, %vm445
        %vm478 = vmand %vm462, %vm446
        %vm479 = vmand %vm463, %vm447
        %vm480 = vmand %vm464, %vm448
        %vm481 = vmand %vm465, %vm449
        %vm482 = vmand %vm466, %vm450
        %vm483 = vmand %vm467, %vm451
        %vm484 = vmand %vm468, %vm452
        %vm485 = vmand %vm469, %vm453
        %vm486 = vmand %vm470, %vm454
        %vm487 = vmand %vm471, %vm455
        %vm488 = vmand %vm472, %vm456
        %v489 = vadd.s32 %v335, 16
        %v490 = vadd.s32 %v342, 16
        %v491 = vadd.s32 %v349, 16
        %v492 = vadd.s32 %v356, 16
        %v493 = vadd.s32 %v363, 16
        %v494 = vadd.s32 %v370, 16
        %v495 = vadd.s32 %v377, 16
        %v496 = vadd.s32 %v384, 16
        %v497 = vadd.s32 %v391, 16
        %v498 = vadd.s32 %v398, 16
        %v499 = vadd.s32 %v405, 16
        %v500 = vadd.s32 %v412, 16
        %v501 = vadd.s32 %v419, 16
        %v502 = vadd.s32 %v426, 16
        %v503 = vadd.s32 %v433, 16
        %v504 = vadd.s32 %v440, 16
        %v505 = vsel %vm473, %v489, %v335
        %v506 = vsel %vm474, %v490, %v342
        %v507 = vsel %vm475, %v491, %v349
        %v508 = vsel %vm476, %v492, %v356
        %v509 = vsel %vm477, %v493, %v363
        %v510 = vsel %vm478, %v494, %v370
        %v511 = vsel %vm479, %v495, %v377
        %v512 = vsel %vm480, %v496, %v384
        %v513 = vsel %vm481, %v497, %v391
        %v514 = vsel %vm482, %v498, %v398
        %v515 = vsel %vm483, %v499, %v405
        %v516 = vsel %vm484, %v500, %v412
        %v517 = vsel %vm485, %v501, %v419
        %v518 = vsel %vm486, %v502, %v426
        %v519 = vsel %vm487, %v503, %v433
        %v520 = vsel %vm488, %v504, %v440
        %vm521 = vcmp.ne.s32.totalorder %v505, 0
        %vm522 = vcmp.ne.s32.totalorder %v506, 0
        %vm523 = vcmp.ne.s32.totalorder %v507, 0
        %vm524 = vcmp.ne.s32.totalorder %v508, 0
        %vm525 = vcmp.ne.s32.totalorder %v509, 0
        %vm526 = vcmp.ne.s32.totalorder %v510, 0
        %vm527 = vcmp.ne.s32.totalorder %v511, 0
        %vm528 = vcmp.ne.s32.totalorder %v512, 0
        %vm529 = vcmp.ne.s32.totalorder %v513, 0
        %vm530 = vcmp.ne.s32.totalorder %v514, 0
        %vm531 = vcmp.ne.s32.totalorder %v515, 0
        %vm532 = vcmp.ne.s32.totalorder %v516, 0
        %vm533 = vcmp.ne.s32.totalorder %v517, 0
        %vm534 = vcmp.ne.s32.totalorder %v518, 0
        %vm535 = vcmp.ne.s32.totalorder %v519, 0
        %vm536 = vcmp.ne.s32.totalorder %v520, 0
        %vm537 = vcmp.ne.s32.totalorder %v505, 15
        %vm538 = vcmp.ne.s32.totalorder %v506, 15
        %vm539 = vcmp.ne.s32.totalorder %v507, 15
        %vm540 = vcmp.ne.s32.totalorder %v508, 15
        %vm541 = vcmp.ne.s32.totalorder %v509, 15
        %vm542 = vcmp.ne.s32.totalorder %v510, 15
        %vm543 = vcmp.ne.s32.totalorder %v511, 15
        %vm544 = vcmp.ne.s32.totalorder %v512, 15
        %vm545 = vcmp.ne.s32.totalorder %v513, 15
        %vm546 = vcmp.ne.s32.totalorder %v514, 15
        %vm547 = vcmp.ne.s32.totalorder %v515, 15
        %vm548 = vcmp.ne.s32.totalorder %v516, 15
        %vm549 = vcmp.ne.s32.totalorder %v517, 15
        %vm550 = vcmp.ne.s32.totalorder %v518, 15
        %vm551 = vcmp.ne.s32.totalorder %v519, 15
        %vm552 = vcmp.ne.s32.totalorder %v520, 15
        %vm569 = vcmask 1040384
        %v570 = vrot.slane %v296, 7
        %v571 = vrot.slane %v297, 7
        %v572 = vsel %vm569, %v570, %v571
        %v573 = vrot.slane %v298, 7
        %v574 = vsel %vm569, %v571, %v573
        %v575 = vrot.slane %v299, 7
        %v576 = vsel %vm569, %v573, %v575
        %v577 = vrot.slane %v300, 7
        %v578 = vsel %vm569, %v575, %v577
        %v579 = vrot.slane %v301, 7
        %v580 = vsel %vm569, %v577, %v579
        %v581 = vrot.slane %v302, 7
        %v582 = vsel %vm569, %v579, %v581
        %v583 = vrot.slane %v303, 7
        %v584 = vsel %vm569, %v581, %v583
        %v585 = vrot.slane %v304, 7
        %v586 = vsel %vm569, %v583, %v585
        %v587 = vrot.slane %v305, 7
        %v588 = vsel %vm569, %v585, %v587
        %v589 = vrot.slane %v306, 7
        %v590 = vsel %vm569, %v587, %v589
        %v591 = vrot.slane %v307, 7
        %v592 = vsel %vm569, %v589, %v591
        %v593 = vrot.slane %v308, 7
        %v594 = vsel %vm569, %v591, %v593
        %v595 = vrot.slane %v309, 7
        %v596 = vsel %vm569, %v593, %v595
        %v597 = vrot.slane %v310, 7
        %v598 = vsel %vm569, %v595, %v597
        %v599 = vrot.slane %v311, 7
        %v600 = vsel %vm569, %v597, %v599
        %v617 = vsel %vm569, 0.0, %v570
        %v618 = vsel %vm521, %v617, 0.0
        %v619 = vsel %vm522, %v572, 0.0
        %v620 = vsel %vm523, %v574, 0.0
        %v621 = vsel %vm524, %v576, 0.0
        %v622 = vsel %vm525, %v578, 0.0
        %v623 = vsel %vm526, %v580, 0.0
        %v624 = vsel %vm527, %v582, 0.0
        %v625 = vsel %vm528, %v584, 0.0
        %v626 = vsel %vm529, %v586, 0.0
        %v627 = vsel %vm530, %v588, 0.0
        %v628 = vsel %vm531, %v590, 0.0
        %v629 = vsel %vm532, %v592, 0.0
        %v630 = vsel %vm533, %v594, 0.0
        %v631 = vsel %vm534, %v596, 0.0
        %v632 = vsel %vm535, %v598, 0.0
        %v633 = vsel %vm536, %v600, 0.0
        %vm634 = vcmask 1046528
        %v635 = vrot.slane %v296, 1
        %v636 = vrot.slane %v297, 1
        %v637 = vsel %vm634, %v635, %v636
        %v638 = vrot.slane %v298, 1
        %v639 = vsel %vm634, %v636, %v638
        %v640 = vrot.slane %v299, 1
        %v641 = vsel %vm634, %v638, %v640
        %v642 = vrot.slane %v300, 1
        %v643 = vsel %vm634, %v640, %v642
        %v644 = vrot.slane %v301, 1
        %v645 = vsel %vm634, %v642, %v644
        %v646 = vrot.slane %v302, 1
        %v647 = vsel %vm634, %v644, %v646
        %v648 = vrot.slane %v303, 1
        %v649 = vsel %vm634, %v646, %v648
        %v650 = vrot.slane %v304, 1
        %v651 = vsel %vm634, %v648, %v650
        %v652 = vrot.slane %v305, 1
        %v653 = vsel %vm634, %v650, %v652
        %v654 = vrot.slane %v306, 1
        %v655 = vsel %vm634, %v652, %v654
        %v656 = vrot.slane %v307, 1
        %v657 = vsel %vm634, %v654, %v656
        %v658 = vrot.slane %v308, 1
        %v659 = vsel %vm634, %v656, %v658
        %v660 = vrot.slane %v309, 1
        %v661 = vsel %vm634, %v658, %v660
        %v662 = vrot.slane %v310, 1
        %v663 = vsel %vm634, %v660, %v662
        %v664 = vrot.slane %v311, 1
        %v665 = vsel %vm634, %v662, %v664
        %v682 = vsel %vm634, %v664, 0.0
        %v683 = vsel %vm537, %v637, 0.0
        %v684 = vsel %vm538, %v639, 0.0
        %v685 = vsel %vm539, %v641, 0.0
        %v686 = vsel %vm540, %v643, 0.0
        %v687 = vsel %vm541, %v645, 0.0
        %v688 = vsel %vm542, %v647, 0.0
        %v689 = vsel %vm543, %v649, 0.0
        %v690 = vsel %vm544, %v651, 0.0
        %v691 = vsel %vm545, %v653, 0.0
        %v692 = vsel %vm546, %v655, 0.0
        %v693 = vsel %vm547, %v657, 0.0
        %v694 = vsel %vm548, %v659, 0.0
        %v695 = vsel %vm549, %v661, 0.0
        %v696 = vsel %vm550, %v663, 0.0
        %v697 = vsel %vm551, %v665, 0.0
        %v698 = vsel %vm552, %v682, 0.0
        %v699 = vpack.c.bf16 %v619, %v618
        %v700 = vpack.c.bf16 %v297, %v296
        %v701 = vpack.c.bf16 %v684, %v683
        %v702 = vpack.c.bf16 %v621, %v620
        %v703 = vpack.c.bf16 %v299, %v298
        %v704 = vpack.c.bf16 %v686, %v685
        %v705 = vpack.c.bf16 %v623, %v622
        %v706 = vpack.c.bf16 %v301, %v300
        %v707 = vpack.c.bf16 %v688, %v687
        %v708 = vpack.c.bf16 %v625, %v624
        %v709 = vpack.c.bf16 %v303, %v302
        %v710 = vpack.c.bf16 %v690, %v689
        %v711 = vpack.c.bf16 %v627, %v626
        %v712 = vpack.c.bf16 %v305, %v304
        %v713 = vpack.c.bf16 %v692, %v691
        %v714 = vpack.c.bf16 %v629, %v628
        %v715 = vpack.c.bf16 %v307, %v306
        %v716 = vpack.c.bf16 %v694, %v693
        %v717 = vpack.c.bf16 %v631, %v630
        %v718 = vpack.c.bf16 %v309, %v308
        %v719 = vpack.c.bf16 %v696, %v695
        %v720 = vpack.c.bf16 %v633, %v632
        %v721 = vpack.c.bf16 %v311, %v310
        %v722 = vpack.c.bf16 %v698, %v697
        %v723 = vld [vmem:[#allocation5] sm:$0xf]
        %v724 = vld [vmem:[#allocation5 + $0x4] sm:$0xf]
        %v725 = vld [vmem:[#allocation5 + $0x8] sm:$0xf]
        %v726 = vld [vmem:[#allocation5 + $0xc] sm:$0xf]
        %v727 = vld [vmem:[#allocation5 + $0x10] sm:$0xf]
        %v728 = vld [vmem:[#allocation5 + $0x14] sm:$0xf]
        %v729 = vld [vmem:[#allocation5 + $0x18] sm:$0xf]
        %v730 = vld [vmem:[#allocation5 + $0x1c] sm:$0xf]
        %v731 = vld [vmem:[#allocation5 + $0x20] sm:$0xf]
        %v732 = vld [vmem:[#allocation5 + $0x24] sm:$0xf]
        %v733 = vld [vmem:[#allocation5 + $0x28] sm:$0xf]
        %v734 = vld [vmem:[#allocation5 + $0x2c] sm:$0xf]
        %v735 = vld [vmem:[#allocation5 + $0x30] sm:$0xf]
        %v736 = vld [vmem:[#allocation5 + $0x34] sm:$0xf]
        %v737 = vld [vmem:[#allocation5 + $0x38] sm:$0xf]
        %v738 = vld [vmem:[#allocation5 + $0x3c] sm:$0xf]
        %v739 = vld [vmem:[#allocation5 + $0x40] sm:$0xf]
        %v740 = vld [vmem:[#allocation5 + $0x44] sm:$0xf]
        %v741 = vld [vmem:[#allocation5 + $0x48] sm:$0xf]
        %v742 = vld [vmem:[#allocation5 + $0x4c] sm:$0xf]
        %v743 = vld [vmem:[#allocation5 + $0x50] sm:$0xf]
        %v744 = vld [vmem:[#allocation5 + $0x54] sm:$0xf]
        %v745 = vld [vmem:[#allocation5 + $0x58] sm:$0xf]
        %v746 = vld [vmem:[#allocation5 + $0x5c] sm:$0xf]
        %v747 = vld [vmem:[#allocation5 + $0x60] sm:$0xf]
        %v748 = vld [vmem:[#allocation5 + $0x64] sm:$0xf]
        %v749 = vld [vmem:[#allocation5 + $0x68] sm:$0xf]
        %v750 = vld [vmem:[#allocation5 + $0x6c] sm:$0xf]
        %v751 = vld [vmem:[#allocation5 + $0x70] sm:$0xf]
        %v752 = vld [vmem:[#allocation5 + $0x74] sm:$0xf]
        %v753 = vld [vmem:[#allocation5 + $0x78] sm:$0xf]
        %v754 = vld [vmem:[#allocation5 + $0x7c] sm:$0xf]
        %v755 = vld [vmem:[#allocation5 + $0x80] sm:$0xf]
        %v756 = vld [vmem:[#allocation5 + $0x84] sm:$0xf]
        %v757 = vld [vmem:[#allocation5 + $0x88] sm:$0xf]
        %v758 = vld [vmem:[#allocation5 + $0x8c] sm:$0xf]
        %v759 = vld [vmem:[#allocation5 + $0x90] sm:$0xf]
        %v760 = vld [vmem:[#allocation5 + $0x94] sm:$0xf]
        %v761 = vld [vmem:[#allocation5 + $0x98] sm:$0xf]
        %v762 = vld [vmem:[#allocation5 + $0x9c] sm:$0xf]
        %v763 = vld [vmem:[#allocation5 + $0xa0] sm:$0xf]
        %v764 = vld [vmem:[#allocation5 + $0xa4] sm:$0xf]
        %v765 = vld [vmem:[#allocation5 + $0xa8] sm:$0xf]
        %v766 = vld [vmem:[#allocation5 + $0xac] sm:$0xf]
        %v767 = vld [vmem:[#allocation5 + $0xb0] sm:$0xf]
        %v768 = vld [vmem:[#allocation5 + $0xb4] sm:$0xf]
        %v769 = vld [vmem:[#allocation5 + $0xb8] sm:$0xf]
        %v770 = vld [vmem:[#allocation5 + $0xbc] sm:$0xf]
        %v771 = vld [vmem:[%s2] sm:$0x1]
        %v773 = vperm.slane %v771, 0
        %v823 = vunpack.c.l.b16 %v723
        %v824 = vunpack.c.l.b16 %v724
        %v825 = vunpack.c.l.b16 %v725
        %v826 = vunpack.c.l.b16 %v726
        %v827 = vunpack.c.l.b16 %v727
        %v828 = vunpack.c.l.b16 %v728
        %v829 = vunpack.c.l.b16 %v729
        %v830 = vunpack.c.l.b16 %v730
        %v831 = vunpack.c.l.b16 %v731
        %v832 = vunpack.c.l.b16 %v732
        %v833 = vunpack.c.l.b16 %v733
        %v834 = vunpack.c.l.b16 %v734
        %v835 = vunpack.c.l.b16 %v735
        %v836 = vunpack.c.l.b16 %v736
        %v837 = vunpack.c.l.b16 %v737
        %v838 = vunpack.c.l.b16 %v738
        %v839 = vunpack.c.l.b16 %v739
        %v840 = vunpack.c.l.b16 %v740
        %v841 = vunpack.c.l.b16 %v741
        %v842 = vunpack.c.l.b16 %v742
        %v843 = vunpack.c.l.b16 %v743
        %v844 = vunpack.c.l.b16 %v744
        %v845 = vunpack.c.l.b16 %v745
        %v846 = vunpack.c.l.b16 %v746
        %v847 = vunpack.c.l.b16 %v747
        %v848 = vunpack.c.l.b16 %v748
        %v849 = vunpack.c.l.b16 %v749
        %v850 = vunpack.c.l.b16 %v750
        %v851 = vunpack.c.l.b16 %v751
        %v852 = vunpack.c.l.b16 %v752
        %v853 = vunpack.c.l.b16 %v753
        %v854 = vunpack.c.l.b16 %v754
        %v855 = vunpack.c.l.b16 %v755
        %v856 = vunpack.c.l.b16 %v756
        %v857 = vunpack.c.l.b16 %v757
        %v858 = vunpack.c.l.b16 %v758
        %v859 = vunpack.c.l.b16 %v759
        %v860 = vunpack.c.l.b16 %v760
        %v861 = vunpack.c.l.b16 %v761
        %v862 = vunpack.c.l.b16 %v762
        %v863 = vunpack.c.l.b16 %v763
        %v864 = vunpack.c.l.b16 %v764
        %v865 = vunpack.c.l.b16 %v765
        %v866 = vunpack.c.l.b16 %v766
        %v867 = vunpack.c.l.b16 %v767
        %v868 = vunpack.c.l.b16 %v768
        %v869 = vunpack.c.l.b16 %v769
        %v870 = vunpack.c.l.b16 %v770
        %v871 = vpack.c.b16 %v824, %v823
        %v872 = vpack.c.b16 %v826, %v825
        %v873 = vpack.c.b16 %v828, %v827
        %v874 = vpack.c.b16 %v830, %v829
        %v875 = vpack.c.b16 %v832, %v831
        %v876 = vpack.c.b16 %v834, %v833
        %v877 = vpack.c.b16 %v836, %v835
        %v878 = vpack.c.b16 %v838, %v837
        %v879 = vpack.c.b16 %v840, %v839
        %v880 = vpack.c.b16 %v842, %v841
        %v881 = vpack.c.b16 %v844, %v843
        %v882 = vpack.c.b16 %v846, %v845
        %v883 = vpack.c.b16 %v848, %v847
        %v884 = vpack.c.b16 %v850, %v849
        %v885 = vpack.c.b16 %v852, %v851
        %v886 = vpack.c.b16 %v854, %v853
        %v887 = vpack.c.b16 %v856, %v855
        %v888 = vpack.c.b16 %v858, %v857
        %v889 = vpack.c.b16 %v860, %v859
        %v890 = vpack.c.b16 %v862, %v861
        %v891 = vpack.c.b16 %v864, %v863
        %v892 = vpack.c.b16 %v866, %v865
        %v893 = vpack.c.b16 %v868, %v867
        %v894 = vpack.c.b16 %v870, %v869
        %919 = vmatpush.bf16.msra.mxu0 %v878
        %920 = vmatpush.bf16.msra.mxu0 %v877
        %921 = vmatpush.bf16.msra.mxu0 %v876
        %922 = vmatpush.bf16.msra.mxu0 %v875
        %923 = vmatpush.bf16.msra.mxu0 %v874
        %924 = vmatpush.bf16.msra.mxu0 %v873
        %925 = vmatpush.bf16.msra.mxu0 %v872
        %926 = vmatpush.bf16.msra.mxu0 %v871
        %927 = vmatmul.bf16.gmra.mxu0 %v699
        %v928 = vpop.f32.mrf.mxu0
        %v929 = vadd.f32 %v773, %v928
        %v930 = vpop.f32.mrf.mxu0
        %v931 = vadd.f32 %v773, %v930
        %932 = vmatmul.bf16.gmra.mxu0 %v702
        %v933 = vpop.f32.mrf.mxu0
        %v934 = vadd.f32 %v773, %v933
        %v935 = vpop.f32.mrf.mxu0
        %v936 = vadd.f32 %v773, %v935
        %937 = vmatmul.bf16.gmra.mxu0 %v705
        %v938 = vpop.f32.mrf.mxu0
        %v939 = vadd.f32 %v773, %v938
        %v940 = vpop.f32.mrf.mxu0
        %v941 = vadd.f32 %v773, %v940
        %942 = vmatmul.bf16.gmra.mxu0 %v708
        %v943 = vpop.f32.mrf.mxu0
        %v944 = vadd.f32 %v773, %v943
        %v945 = vpop.f32.mrf.mxu0
        %v946 = vadd.f32 %v773, %v945
        %947 = vmatmul.bf16.gmra.mxu0 %v711
        %v948 = vpop.f32.mrf.mxu0
        %v949 = vadd.f32 %v773, %v948
        %v950 = vpop.f32.mrf.mxu0
        %v951 = vadd.f32 %v773, %v950
        %952 = vmatmul.bf16.gmra.mxu0 %v714
        %v953 = vpop.f32.mrf.mxu0
        %v954 = vadd.f32 %v773, %v953
        %v955 = vpop.f32.mrf.mxu0
        %v956 = vadd.f32 %v773, %v955
        %957 = vmatmul.bf16.gmra.mxu0 %v717
        %v958 = vpop.f32.mrf.mxu0
        %v959 = vadd.f32 %v773, %v958
        %v960 = vpop.f32.mrf.mxu0
        %v961 = vadd.f32 %v773, %v960
        %962 = vmatmul.bf16.gmra.mxu0 %v720
        %v963 = vpop.f32.mrf.mxu0
        %v964 = vadd.f32 %v773, %v963
        %v965 = vpop.f32.mrf.mxu0
        %v966 = vadd.f32 %v773, %v965
        %967 = vdwg.mxu0
        %968 = vmatpush.bf16.msra.mxu0 %v886
        %969 = vmatpush.bf16.msra.mxu0 %v885
        %970 = vmatpush.bf16.msra.mxu0 %v884
        %971 = vmatpush.bf16.msra.mxu0 %v883
        %972 = vmatpush.bf16.msra.mxu0 %v882
        %973 = vmatpush.bf16.msra.mxu0 %v881
        %974 = vmatpush.bf16.msra.mxu0 %v880
        %975 = vmatpush.bf16.msra.mxu0 %v879
        %976 = vmatmul.bf16.gmra.mxu0 %v700
        %v977 = vpop.f32.mrf.mxu0
        %v978 = vadd.f32 %v929, %v977
        %v979 = vpop.f32.mrf.mxu0
        %v980 = vadd.f32 %v931, %v979
        %981 = vmatmul.bf16.gmra.mxu0 %v703
        %v982 = vpop.f32.mrf.mxu0
        %v983 = vadd.f32 %v934, %v982
        %v984 = vpop.f32.mrf.mxu0
        %v985 = vadd.f32 %v936, %v984
        %986 = vmatmul.bf16.gmra.mxu0 %v706
        %v987 = vpop.f32.mrf.mxu0
        %v988 = vadd.f32 %v939, %v987
        %v989 = vpop.f32.mrf.mxu0
        %v990 = vadd.f32 %v941, %v989
        %991 = vmatmul.bf16.gmra.mxu0 %v709
        %v992 = vpop.f32.mrf.mxu0
        %v993 = vadd.f32 %v944, %v992
        %v994 = vpop.f32.mrf.mxu0
        %v995 = vadd.f32 %v946, %v994
        %996 = vmatmul.bf16.gmra.mxu0 %v712
        %v997 = vpop.f32.mrf.mxu0
        %v998 = vadd.f32 %v949, %v997
        %v999 = vpop.f32.mrf.mxu0
        %v1000 = vadd.f32 %v951, %v999
        %1001 = vmatmul.bf16.gmra.mxu0 %v715
        %v1002 = vpop.f32.mrf.mxu0
        %v1003 = vadd.f32 %v954, %v1002
        %v1004 = vpop.f32.mrf.mxu0
        %v1005 = vadd.f32 %v956, %v1004
        %1006 = vmatmul.bf16.gmra.mxu0 %v718
        %v1007 = vpop.f32.mrf.mxu0
        %v1008 = vadd.f32 %v959, %v1007
        %v1009 = vpop.f32.mrf.mxu0
        %v1010 = vadd.f32 %v961, %v1009
        %1011 = vmatmul.bf16.gmra.mxu0 %v721
        %v1012 = vpop.f32.mrf.mxu0
        %v1013 = vadd.f32 %v964, %v1012
        %v1014 = vpop.f32.mrf.mxu0
        %v1015 = vadd.f32 %v966, %v1014
        %1016 = vdwg.mxu0
        %1017 = vmatpush.bf16.msra.mxu0 %v894
        %1018 = vmatpush.bf16.msra.mxu0 %v893
        %1019 = vmatpush.bf16.msra.mxu0 %v892
        %1020 = vmatpush.bf16.msra.mxu0 %v891
        %1021 = vmatpush.bf16.msra.mxu0 %v890
        %1022 = vmatpush.bf16.msra.mxu0 %v889
        %1023 = vmatpush.bf16.msra.mxu0 %v888
        %1024 = vmatpush.bf16.msra.mxu0 %v887
        %1025 = vmatmul.bf16.gmra.mxu0 %v701
        %v1026 = vpop.f32.mrf.mxu0
        %v1027 = vadd.f32 %v978, %v1026
        %v1028 = vpop.f32.mrf.mxu0
        %v1029 = vadd.f32 %v980, %v1028
        %1030 = vmatmul.bf16.gmra.mxu0 %v704
        %v1031 = vpop.f32.mrf.mxu0
        %v1032 = vadd.f32 %v983, %v1031
        %v1033 = vpop.f32.mrf.mxu0
        %v1034 = vadd.f32 %v985, %v1033
        %1035 = vmatmul.bf16.gmra.mxu0 %v707
        %v1036 = vpop.f32.mrf.mxu0
        %v1037 = vadd.f32 %v988, %v1036
        %v1038 = vpop.f32.mrf.mxu0
        %v1039 = vadd.f32 %v990, %v1038
        %1040 = vmatmul.bf16.gmra.mxu0 %v710
        %v1041 = vpop.f32.mrf.mxu0
        %v1042 = vadd.f32 %v993, %v1041
        %v1043 = vpop.f32.mrf.mxu0
        %v1044 = vadd.f32 %v995, %v1043
        %1045 = vmatmul.bf16.gmra.mxu0 %v713
        %v1046 = vpop.f32.mrf.mxu0
        %v1047 = vadd.f32 %v998, %v1046
        %v1048 = vpop.f32.mrf.mxu0
        %v1049 = vadd.f32 %v1000, %v1048
        %1050 = vmatmul.bf16.gmra.mxu0 %v716
        %v1051 = vpop.f32.mrf.mxu0
        %v1052 = vadd.f32 %v1003, %v1051
        %v1053 = vpop.f32.mrf.mxu0
        %v1054 = vadd.f32 %v1005, %v1053
        %1055 = vmatmul.bf16.gmra.mxu0 %v719
        %v1056 = vpop.f32.mrf.mxu0
        %v1057 = vadd.f32 %v1008, %v1056
        %v1058 = vpop.f32.mrf.mxu0
        %v1059 = vadd.f32 %v1010, %v1058
        %1060 = vmatmul.bf16.gmra.mxu0 %v722
        %v1061 = vpop.f32.mrf.mxu0
        %v1062 = vadd.f32 %v1013, %v1061
        %v1063 = vpop.f32.mrf.mxu0
        %v1064 = vadd.f32 %v1015, %v1063
        %1065 = vdwg.mxu0
        %v1066 = vmax.f32 %v1027, 0.0
        %v1067 = vmax.f32 %v1029, 0.0
        %v1068 = vmax.f32 %v1032, 0.0
        %v1069 = vmax.f32 %v1034, 0.0
        %v1070 = vmax.f32 %v1037, 0.0
        %v1071 = vmax.f32 %v1039, 0.0
        %v1072 = vmax.f32 %v1042, 0.0
        %v1073 = vmax.f32 %v1044, 0.0
        %v1074 = vmax.f32 %v1047, 0.0
        %v1075 = vmax.f32 %v1049, 0.0
        %v1076 = vmax.f32 %v1052, 0.0
        %v1077 = vmax.f32 %v1054, 0.0
        %v1078 = vmax.f32 %v1057, 0.0
        %v1079 = vmax.f32 %v1059, 0.0
        %v1080 = vmax.f32 %v1062, 0.0
        %v1081 = vmax.f32 %v1064, 0.0
        %v1098 = vrot.slane %v1066, 7
        %v1099 = vrot.slane %v1067, 7
        %v1100 = vsel %vm569, %v1098, %v1099
        %v1101 = vrot.slane %v1068, 7
        %v1102 = vsel %vm569, %v1099, %v1101
        %v1103 = vrot.slane %v1069, 7
        %v1104 = vsel %vm569, %v1101, %v1103
        %v1105 = vrot.slane %v1070, 7
        %v1106 = vsel %vm569, %v1103, %v1105
        %v1107 = vrot.slane %v1071, 7
        %v1108 = vsel %vm569, %v1105, %v1107
        %v1109 = vrot.slane %v1072, 7
        %v1110 = vsel %vm569, %v1107, %v1109
        %v1111 = vrot.slane %v1073, 7
        %v1112 = vsel %vm569, %v1109, %v1111
        %v1113 = vrot.slane %v1074, 7
        %v1114 = vsel %vm569, %v1111, %v1113
        %v1115 = vrot.slane %v1075, 7
        %v1116 = vsel %vm569, %v1113, %v1115
        %v1117 = vrot.slane %v1076, 7
        %v1118 = vsel %vm569, %v1115, %v1117
        %v1119 = vrot.slane %v1077, 7
        %v1120 = vsel %vm569, %v1117, %v1119
        %v1121 = vrot.slane %v1078, 7
        %v1122 = vsel %vm569, %v1119, %v1121
        %v1123 = vrot.slane %v1079, 7
        %v1124 = vsel %vm569, %v1121, %v1123
        %v1125 = vrot.slane %v1080, 7
        %v1126 = vsel %vm569, %v1123, %v1125
        %v1127 = vrot.slane %v1081, 7
        %v1128 = vsel %vm569, %v1125, %v1127
        %v1145 = vsel %vm569, 0.0, %v1098
        %v1146 = vsel %vm521, %v1145, 0.0
        %v1147 = vsel %vm522, %v1100, 0.0
        %v1148 = vsel %vm523, %v1102, 0.0
        %v1149 = vsel %vm524, %v1104, 0.0
        %v1150 = vsel %vm525, %v1106, 0.0
        %v1151 = vsel %vm526, %v1108, 0.0
        %v1152 = vsel %vm527, %v1110, 0.0
        %v1153 = vsel %vm528, %v1112, 0.0
        %v1154 = vsel %vm529, %v1114, 0.0
        %v1155 = vsel %vm530, %v1116, 0.0
        %v1156 = vsel %vm531, %v1118, 0.0
        %v1157 = vsel %vm532, %v1120, 0.0
        %v1158 = vsel %vm533, %v1122, 0.0
        %v1159 = vsel %vm534, %v1124, 0.0
        %v1160 = vsel %vm535, %v1126, 0.0
        %v1161 = vsel %vm536, %v1128, 0.0
        %v1162 = vrot.slane %v1066, 1
        %v1163 = vrot.slane %v1067, 1
        %v1164 = vsel %vm634, %v1162, %v1163
        %v1165 = vrot.slane %v1068, 1
        %v1166 = vsel %vm634, %v1163, %v1165
        %v1167 = vrot.slane %v1069, 1
        %v1168 = vsel %vm634, %v1165, %v1167
        %v1169 = vrot.slane %v1070, 1
        %v1170 = vsel %vm634, %v1167, %v1169
        %v1171 = vrot.slane %v1071, 1
        %v1172 = vsel %vm634, %v1169, %v1171
        %v1173 = vrot.slane %v1072, 1
        %v1174 = vsel %vm634, %v1171, %v1173
        %v1175 = vrot.slane %v1073, 1
        %v1176 = vsel %vm634, %v1173, %v1175
        %v1177 = vrot.slane %v1074, 1
        %v1178 = vsel %vm634, %v1175, %v1177
        %v1179 = vrot.slane %v1075, 1
        %v1180 = vsel %vm634, %v1177, %v1179
        %v1181 = vrot.slane %v1076, 1
        %v1182 = vsel %vm634, %v1179, %v1181
        %v1183 = vrot.slane %v1077, 1
        %v1184 = vsel %vm634, %v1181, %v1183
        %v1185 = vrot.slane %v1078, 1
        %v1186 = vsel %vm634, %v1183, %v1185
        %v1187 = vrot.slane %v1079, 1
        %v1188 = vsel %vm634, %v1185, %v1187
        %v1189 = vrot.slane %v1080, 1
        %v1190 = vsel %vm634, %v1187, %v1189
        %v1191 = vrot.slane %v1081, 1
        %v1192 = vsel %vm634, %v1189, %v1191
        %v1209 = vsel %vm634, %v1191, 0.0
        %v1210 = vsel %vm537, %v1164, 0.0
        %v1211 = vsel %vm538, %v1166, 0.0
        %v1212 = vsel %vm539, %v1168, 0.0
        %v1213 = vsel %vm540, %v1170, 0.0
        %v1214 = vsel %vm541, %v1172, 0.0
        %v1215 = vsel %vm542, %v1174, 0.0
        %v1216 = vsel %vm543, %v1176, 0.0
        %v1217 = vsel %vm544, %v1178, 0.0
        %v1218 = vsel %vm545, %v1180, 0.0
        %v1219 = vsel %vm546, %v1182, 0.0
        %v1220 = vsel %vm547, %v1184, 0.0
        %v1221 = vsel %vm548, %v1186, 0.0
        %v1222 = vsel %vm549, %v1188, 0.0
        %v1223 = vsel %vm550, %v1190, 0.0
        %v1224 = vsel %vm551, %v1192, 0.0
        %v1225 = vsel %vm552, %v1209, 0.0
        %v1226 = vpack.c.bf16 %v1147, %v1146
        %v1227 = vpack.c.bf16 %v1067, %v1066
        %v1228 = vpack.c.bf16 %v1211, %v1210
        %v1229 = vpack.c.bf16 %v1149, %v1148
        %v1230 = vpack.c.bf16 %v1069, %v1068
        %v1231 = vpack.c.bf16 %v1213, %v1212
        %v1232 = vpack.c.bf16 %v1151, %v1150
        %v1233 = vpack.c.bf16 %v1071, %v1070
        %v1234 = vpack.c.bf16 %v1215, %v1214
        %v1235 = vpack.c.bf16 %v1153, %v1152
        %v1236 = vpack.c.bf16 %v1073, %v1072
        %v1237 = vpack.c.bf16 %v1217, %v1216
        %v1238 = vpack.c.bf16 %v1155, %v1154
        %v1239 = vpack.c.bf16 %v1075, %v1074
        %v1240 = vpack.c.bf16 %v1219, %v1218
        %v1241 = vpack.c.bf16 %v1157, %v1156
        %v1242 = vpack.c.bf16 %v1077, %v1076
        %v1243 = vpack.c.bf16 %v1221, %v1220
        %v1244 = vpack.c.bf16 %v1159, %v1158
        %v1245 = vpack.c.bf16 %v1079, %v1078
        %v1246 = vpack.c.bf16 %v1223, %v1222
        %v1247 = vpack.c.bf16 %v1161, %v1160
        %v1248 = vpack.c.bf16 %v1081, %v1080
        %v1249 = vpack.c.bf16 %v1225, %v1224
        %v1250 = vld [vmem:[#allocation7] sm:$0xf]
        %v1251 = vld [vmem:[#allocation7 + $0x4] sm:$0xf]
        %v1252 = vld [vmem:[#allocation7 + $0x8] sm:$0xf]
        %v1253 = vld [vmem:[#allocation7 + $0xc] sm:$0xf]
        %v1254 = vld [vmem:[#allocation7 + $0x10] sm:$0xf]
        %v1255 = vld [vmem:[#allocation7 + $0x14] sm:$0xf]
        %v1256 = vld [vmem:[#allocation7 + $0x18] sm:$0xf]
        %v1257 = vld [vmem:[#allocation7 + $0x1c] sm:$0xf]
        %v1258 = vld [vmem:[#allocation7 + $0x20] sm:$0xf]
        %v1259 = vld [vmem:[#allocation7 + $0x24] sm:$0xf]
        %v1260 = vld [vmem:[#allocation7 + $0x28] sm:$0xf]
        %v1261 = vld [vmem:[#allocation7 + $0x2c] sm:$0xf]
        %v1262 = vld [vmem:[#allocation7 + $0x30] sm:$0xf]
        %v1263 = vld [vmem:[#allocation7 + $0x34] sm:$0xf]
        %v1264 = vld [vmem:[#allocation7 + $0x38] sm:$0xf]
        %v1265 = vld [vmem:[#allocation7 + $0x3c] sm:$0xf]
        %v1266 = vld [vmem:[#allocation7 + $0x40] sm:$0xf]
        %v1267 = vld [vmem:[#allocation7 + $0x44] sm:$0xf]
        %v1268 = vld [vmem:[#allocation7 + $0x48] sm:$0xf]
        %v1269 = vld [vmem:[#allocation7 + $0x4c] sm:$0xf]
        %v1270 = vld [vmem:[#allocation7 + $0x50] sm:$0xf]
        %v1271 = vld [vmem:[#allocation7 + $0x54] sm:$0xf]
        %v1272 = vld [vmem:[#allocation7 + $0x58] sm:$0xf]
        %v1273 = vld [vmem:[#allocation7 + $0x5c] sm:$0xf]
        %v1274 = vld [vmem:[#allocation7 + $0x60] sm:$0xf]
        %v1275 = vld [vmem:[#allocation7 + $0x64] sm:$0xf]
        %v1276 = vld [vmem:[#allocation7 + $0x68] sm:$0xf]
        %v1277 = vld [vmem:[#allocation7 + $0x6c] sm:$0xf]
        %v1278 = vld [vmem:[#allocation7 + $0x70] sm:$0xf]
        %v1279 = vld [vmem:[#allocation7 + $0x74] sm:$0xf]
        %v1280 = vld [vmem:[#allocation7 + $0x78] sm:$0xf]
        %v1281 = vld [vmem:[#allocation7 + $0x7c] sm:$0xf]
        %v1282 = vld [vmem:[#allocation7 + $0x80] sm:$0xf]
        %v1283 = vld [vmem:[#allocation7 + $0x84] sm:$0xf]
        %v1284 = vld [vmem:[#allocation7 + $0x88] sm:$0xf]
        %v1285 = vld [vmem:[#allocation7 + $0x8c] sm:$0xf]
        %v1286 = vld [vmem:[#allocation7 + $0x90] sm:$0xf]
        %v1287 = vld [vmem:[#allocation7 + $0x94] sm:$0xf]
        %v1288 = vld [vmem:[#allocation7 + $0x98] sm:$0xf]
        %v1289 = vld [vmem:[#allocation7 + $0x9c] sm:$0xf]
        %v1290 = vld [vmem:[#allocation7 + $0xa0] sm:$0xf]
        %v1291 = vld [vmem:[#allocation7 + $0xa4] sm:$0xf]
        %v1292 = vld [vmem:[#allocation7 + $0xa8] sm:$0xf]
        %v1293 = vld [vmem:[#allocation7 + $0xac] sm:$0xf]
        %v1294 = vld [vmem:[#allocation7 + $0xb0] sm:$0xf]
        %v1295 = vld [vmem:[#allocation7 + $0xb4] sm:$0xf]
        %v1296 = vld [vmem:[#allocation7 + $0xb8] sm:$0xf]
        %v1297 = vld [vmem:[#allocation7 + $0xbc] sm:$0xf]
        %v1298 = vld [vmem:[%s4] sm:$0x1]
        %v1300 = vperm.slane %v1298, 0
        %v1350 = vunpack.c.l.b16 %v1250
        %v1351 = vunpack.c.l.b16 %v1251
        %v1352 = vunpack.c.l.b16 %v1252
        %v1353 = vunpack.c.l.b16 %v1253
        %v1354 = vunpack.c.l.b16 %v1254
        %v1355 = vunpack.c.l.b16 %v1255
        %v1356 = vunpack.c.l.b16 %v1256
        %v1357 = vunpack.c.l.b16 %v1257
        %v1358 = vunpack.c.l.b16 %v1258
        %v1359 = vunpack.c.l.b16 %v1259
        %v1360 = vunpack.c.l.b16 %v1260
        %v1361 = vunpack.c.l.b16 %v1261
        %v1362 = vunpack.c.l.b16 %v1262
        %v1363 = vunpack.c.l.b16 %v1263
        %v1364 = vunpack.c.l.b16 %v1264
        %v1365 = vunpack.c.l.b16 %v1265
        %v1366 = vunpack.c.l.b16 %v1266
        %v1367 = vunpack.c.l.b16 %v1267
        %v1368 = vunpack.c.l.b16 %v1268
        %v1369 = vunpack.c.l.b16 %v1269
        %v1370 = vunpack.c.l.b16 %v1270
        %v1371 = vunpack.c.l.b16 %v1271
        %v1372 = vunpack.c.l.b16 %v1272
        %v1373 = vunpack.c.l.b16 %v1273
        %v1374 = vunpack.c.l.b16 %v1274
        %v1375 = vunpack.c.l.b16 %v1275
        %v1376 = vunpack.c.l.b16 %v1276
        %v1377 = vunpack.c.l.b16 %v1277
        %v1378 = vunpack.c.l.b16 %v1278
        %v1379 = vunpack.c.l.b16 %v1279
        %v1380 = vunpack.c.l.b16 %v1280
        %v1381 = vunpack.c.l.b16 %v1281
        %v1382 = vunpack.c.l.b16 %v1282
        %v1383 = vunpack.c.l.b16 %v1283
        %v1384 = vunpack.c.l.b16 %v1284
        %v1385 = vunpack.c.l.b16 %v1285
        %v1386 = vunpack.c.l.b16 %v1286
        %v1387 = vunpack.c.l.b16 %v1287
        %v1388 = vunpack.c.l.b16 %v1288
        %v1389 = vunpack.c.l.b16 %v1289
        %v1390 = vunpack.c.l.b16 %v1290
        %v1391 = vunpack.c.l.b16 %v1291
        %v1392 = vunpack.c.l.b16 %v1292
        %v1393 = vunpack.c.l.b16 %v1293
        %v1394 = vunpack.c.l.b16 %v1294
        %v1395 = vunpack.c.l.b16 %v1295
        %v1396 = vunpack.c.l.b16 %v1296
        %v1397 = vunpack.c.l.b16 %v1297
        %v1398 = vpack.c.b16 %v1351, %v1350
        %v1399 = vpack.c.b16 %v1353, %v1352
        %v1400 = vpack.c.b16 %v1355, %v1354
        %v1401 = vpack.c.b16 %v1357, %v1356
        %v1402 = vpack.c.b16 %v1359, %v1358
        %v1403 = vpack.c.b16 %v1361, %v1360
        %v1404 = vpack.c.b16 %v1363, %v1362
        %v1405 = vpack.c.b16 %v1365, %v1364
        %v1406 = vpack.c.b16 %v1367, %v1366
        %v1407 = vpack.c.b16 %v1369, %v1368
        %v1408 = vpack.c.b16 %v1371, %v1370
        %v1409 = vpack.c.b16 %v1373, %v1372
        %v1410 = vpack.c.b16 %v1375, %v1374
        %v1411 = vpack.c.b16 %v1377, %v1376
        %v1412 = vpack.c.b16 %v1379, %v1378
        %v1413 = vpack.c.b16 %v1381, %v1380
        %v1414 = vpack.c.b16 %v1383, %v1382
        %v1415 = vpack.c.b16 %v1385, %v1384
        %v1416 = vpack.c.b16 %v1387, %v1386
        %v1417 = vpack.c.b16 %v1389, %v1388
        %v1418 = vpack.c.b16 %v1391, %v1390
        %v1419 = vpack.c.b16 %v1393, %v1392
        %v1420 = vpack.c.b16 %v1395, %v1394
        %v1421 = vpack.c.b16 %v1397, %v1396
        %1446 = vmatpush.bf16.msra.mxu0 %v1405
        %1447 = vmatpush.bf16.msra.mxu0 %v1404
        %1448 = vmatpush.bf16.msra.mxu0 %v1403
        %1449 = vmatpush.bf16.msra.mxu0 %v1402
        %1450 = vmatpush.bf16.msra.mxu0 %v1401
        %1451 = vmatpush.bf16.msra.mxu0 %v1400
        %1452 = vmatpush.bf16.msra.mxu0 %v1399
        %1453 = vmatpush.bf16.msra.mxu0 %v1398
        %1454 = vmatmul.bf16.gmra.mxu0 %v1226
        %v1455 = vpop.f32.mrf.mxu0
        %v1456 = vadd.f32 %v1300, %v1455
        %v1457 = vpop.f32.mrf.mxu0
        %v1458 = vadd.f32 %v1300, %v1457
        %1459 = vmatmul.bf16.gmra.mxu0 %v1229
        %v1460 = vpop.f32.mrf.mxu0
        %v1461 = vadd.f32 %v1300, %v1460
        %v1462 = vpop.f32.mrf.mxu0
        %v1463 = vadd.f32 %v1300, %v1462
        %1464 = vmatmul.bf16.gmra.mxu0 %v1232
        %v1465 = vpop.f32.mrf.mxu0
        %v1466 = vadd.f32 %v1300, %v1465
        %v1467 = vpop.f32.mrf.mxu0
        %v1468 = vadd.f32 %v1300, %v1467
        %1469 = vmatmul.bf16.gmra.mxu0 %v1235
        %v1470 = vpop.f32.mrf.mxu0
        %v1471 = vadd.f32 %v1300, %v1470
        %v1472 = vpop.f32.mrf.mxu0
        %v1473 = vadd.f32 %v1300, %v1472
        %1474 = vmatmul.bf16.gmra.mxu0 %v1238
        %v1475 = vpop.f32.mrf.mxu0
        %v1476 = vadd.f32 %v1300, %v1475
        %v1477 = vpop.f32.mrf.mxu0
        %v1478 = vadd.f32 %v1300, %v1477
        %1479 = vmatmul.bf16.gmra.mxu0 %v1241
        %v1480 = vpop.f32.mrf.mxu0
        %v1481 = vadd.f32 %v1300, %v1480
        %v1482 = vpop.f32.mrf.mxu0
        %v1483 = vadd.f32 %v1300, %v1482
        %1484 = vmatmul.bf16.gmra.mxu0 %v1244
        %v1485 = vpop.f32.mrf.mxu0
        %v1486 = vadd.f32 %v1300, %v1485
        %v1487 = vpop.f32.mrf.mxu0
        %v1488 = vadd.f32 %v1300, %v1487
        %1489 = vmatmul.bf16.gmra.mxu0 %v1247
        %v1490 = vpop.f32.mrf.mxu0
        %v1491 = vadd.f32 %v1300, %v1490
        %v1492 = vpop.f32.mrf.mxu0
        %v1493 = vadd.f32 %v1300, %v1492
        %1494 = vdwg.mxu0
        %1495 = vmatpush.bf16.msra.mxu0 %v1413
        %1496 = vmatpush.bf16.msra.mxu0 %v1412
        %1497 = vmatpush.bf16.msra.mxu0 %v1411
        %1498 = vmatpush.bf16.msra.mxu0 %v1410
        %1499 = vmatpush.bf16.msra.mxu0 %v1409
        %1500 = vmatpush.bf16.msra.mxu0 %v1408
        %1501 = vmatpush.bf16.msra.mxu0 %v1407
        %1502 = vmatpush.bf16.msra.mxu0 %v1406
        %1503 = vmatmul.bf16.gmra.mxu0 %v1227
        %v1504 = vpop.f32.mrf.mxu0
        %v1505 = vadd.f32 %v1456, %v1504
        %v1506 = vpop.f32.mrf.mxu0
        %v1507 = vadd.f32 %v1458, %v1506
        %1508 = vmatmul.bf16.gmra.mxu0 %v1230
        %v1509 = vpop.f32.mrf.mxu0
        %v1510 = vadd.f32 %v1461, %v1509
        %v1511 = vpop.f32.mrf.mxu0
        %v1512 = vadd.f32 %v1463, %v1511
        %1513 = vmatmul.bf16.gmra.mxu0 %v1233
        %v1514 = vpop.f32.mrf.mxu0
        %v1515 = vadd.f32 %v1466, %v1514
        %v1516 = vpop.f32.mrf.mxu0
        %v1517 = vadd.f32 %v1468, %v1516
        %1518 = vmatmul.bf16.gmra.mxu0 %v1236
        %v1519 = vpop.f32.mrf.mxu0
        %v1520 = vadd.f32 %v1471, %v1519
        %v1521 = vpop.f32.mrf.mxu0
        %v1522 = vadd.f32 %v1473, %v1521
        %1523 = vmatmul.bf16.gmra.mxu0 %v1239
        %v1524 = vpop.f32.mrf.mxu0
        %v1525 = vadd.f32 %v1476, %v1524
        %v1526 = vpop.f32.mrf.mxu0
        %v1527 = vadd.f32 %v1478, %v1526
        %1528 = vmatmul.bf16.gmra.mxu0 %v1242
        %v1529 = vpop.f32.mrf.mxu0
        %v1530 = vadd.f32 %v1481, %v1529
        %v1531 = vpop.f32.mrf.mxu0
        %v1532 = vadd.f32 %v1483, %v1531
        %1533 = vmatmul.bf16.gmra.mxu0 %v1245
        %v1534 = vpop.f32.mrf.mxu0
        %v1535 = vadd.f32 %v1486, %v1534
        %v1536 = vpop.f32.mrf.mxu0
        %v1537 = vadd.f32 %v1488, %v1536
        %1538 = vmatmul.bf16.gmra.mxu0 %v1248
        %v1539 = vpop.f32.mrf.mxu0
        %v1540 = vadd.f32 %v1491, %v1539
        %v1541 = vpop.f32.mrf.mxu0
        %v1542 = vadd.f32 %v1493, %v1541
        %1543 = vdwg.mxu0
        %1544 = vmatpush.bf16.msra.mxu0 %v1421
        %1545 = vmatpush.bf16.msra.mxu0 %v1420
        %1546 = vmatpush.bf16.msra.mxu0 %v1419
        %1547 = vmatpush.bf16.msra.mxu0 %v1418
        %1548 = vmatpush.bf16.msra.mxu0 %v1417
        %1549 = vmatpush.bf16.msra.mxu0 %v1416
        %1550 = vmatpush.bf16.msra.mxu0 %v1415
        %1551 = vmatpush.bf16.msra.mxu0 %v1414
        %1552 = vmatmul.bf16.gmra.mxu0 %v1228
        %v1553 = vpop.f32.mrf.mxu0
        %v1554 = vadd.f32 %v1505, %v1553
        %v1555 = vpop.f32.mrf.mxu0
        %v1556 = vadd.f32 %v1507, %v1555
        %1557 = vmatmul.bf16.gmra.mxu0 %v1231
        %v1558 = vpop.f32.mrf.mxu0
        %v1559 = vadd.f32 %v1510, %v1558
        %v1560 = vpop.f32.mrf.mxu0
        %v1561 = vadd.f32 %v1512, %v1560
        %1562 = vmatmul.bf16.gmra.mxu0 %v1234
        %v1563 = vpop.f32.mrf.mxu0
        %v1564 = vadd.f32 %v1515, %v1563
        %v1565 = vpop.f32.mrf.mxu0
        %v1566 = vadd.f32 %v1517, %v1565
        %1567 = vmatmul.bf16.gmra.mxu0 %v1237
        %v1568 = vpop.f32.mrf.mxu0
        %v1569 = vadd.f32 %v1520, %v1568
        %v1570 = vpop.f32.mrf.mxu0
        %v1571 = vadd.f32 %v1522, %v1570
        %1572 = vmatmul.bf16.gmra.mxu0 %v1240
        %v1573 = vpop.f32.mrf.mxu0
        %v1574 = vadd.f32 %v1525, %v1573
        %v1575 = vpop.f32.mrf.mxu0
        %v1576 = vadd.f32 %v1527, %v1575
        %1577 = vmatmul.bf16.gmra.mxu0 %v1243
        %v1578 = vpop.f32.mrf.mxu0
        %v1579 = vadd.f32 %v1530, %v1578
        %v1580 = vpop.f32.mrf.mxu0
        %v1581 = vadd.f32 %v1532, %v1580
        %1582 = vmatmul.bf16.gmra.mxu0 %v1246
        %v1583 = vpop.f32.mrf.mxu0
        %v1584 = vadd.f32 %v1535, %v1583
        %v1585 = vpop.f32.mrf.mxu0
        %v1586 = vadd.f32 %v1537, %v1585
        %1587 = vmatmul.bf16.gmra.mxu0 %v1249
        %v1588 = vpop.f32.mrf.mxu0
        %v1589 = vadd.f32 %v1540, %v1588
        %v1590 = vpop.f32.mrf.mxu0
        %v1591 = vadd.f32 %v1542, %v1590
        %1592 = vdwg.mxu0
        %v1593 = vadd.f32 %v1554, %v296
        %v1594 = vadd.f32 %v1556, %v297
        %v1595 = vadd.f32 %v1559, %v298
        %v1596 = vadd.f32 %v1561, %v299
        %v1597 = vadd.f32 %v1564, %v300
        %v1598 = vadd.f32 %v1566, %v301
        %v1599 = vadd.f32 %v1569, %v302
        %v1600 = vadd.f32 %v1571, %v303
        %v1601 = vadd.f32 %v1574, %v304
        %v1602 = vadd.f32 %v1576, %v305
        %v1603 = vadd.f32 %v1579, %v306
        %v1604 = vadd.f32 %v1581, %v307
        %v1605 = vadd.f32 %v1584, %v308
        %v1606 = vadd.f32 %v1586, %v309
        %v1607 = vadd.f32 %v1589, %v310
        %v1608 = vadd.f32 %v1591, %v311
        %v1609 = vmax.f32 %v1593, 0.0
        %v1610 = vmax.f32 %v1594, 0.0
        %v1611 = vmax.f32 %v1595, 0.0
        %v1612 = vmax.f32 %v1596, 0.0
        %v1613 = vmax.f32 %v1597, 0.0
        %v1614 = vmax.f32 %v1598, 0.0
        %v1615 = vmax.f32 %v1599, 0.0
        %v1616 = vmax.f32 %v1600, 0.0
        %v1617 = vmax.f32 %v1601, 0.0
        %v1618 = vmax.f32 %v1602, 0.0
        %v1619 = vmax.f32 %v1603, 0.0
        %v1620 = vmax.f32 %v1604, 0.0
        %v1621 = vmax.f32 %v1605, 0.0
        %v1622 = vmax.f32 %v1606, 0.0
        %v1623 = vmax.f32 %v1607, 0.0
        %v1624 = vmax.f32 %v1608, 0.0
        %1625 = vst [vmem:[%s277] sm:$0xff] %v1609
        %1626 = vst [vmem:[%s277 + $0x8] sm:$0xff] %v1610
        %1627 = vst [vmem:[%s277 + $0x10] sm:$0xff] %v1611
        %1628 = vst [vmem:[%s277 + $0x18] sm:$0xff] %v1612
        %1629 = vst [vmem:[%s277 + $0x20] sm:$0xff] %v1613
        %1630 = vst [vmem:[%s277 + $0x28] sm:$0xff] %v1614
        %1631 = vst [vmem:[%s277 + $0x30] sm:$0xff] %v1615
        %1632 = vst [vmem:[%s277 + $0x38] sm:$0xff] %v1616
        %1633 = vst [vmem:[%s277 + $0x40] sm:$0xff] %v1617
        %1634 = vst [vmem:[%s277 + $0x48] sm:$0xff] %v1618
        %1635 = vst [vmem:[%s277 + $0x50] sm:$0xff] %v1619
        %1636 = vst [vmem:[%s277 + $0x58] sm:$0xff] %v1620
        %1637 = vst [vmem:[%s277 + $0x60] sm:$0xff] %v1621
        %1638 = vst [vmem:[%s277 + $0x68] sm:$0xff] %v1622
        %1639 = vst [vmem:[%s277 + $0x70] sm:$0xff] %v1623
        %1640 = vst [vmem:[%s277 + $0x78] sm:$0xff] %v1624
        %s1641 = sand.u32 %s141, 1
        %s1642 = scalar_lea.sflag [#allocation4], %s1641
        %s1643 = sand.u32 %s141, 1
        %s1644 = smul.addr %s1643, 128
        %s1645 = scalar_lea.vmem [#allocation8], %s1644
        // Predicated region
        $region53: #{tpu_custom_call.1} parent=39 // pred_check
          %p1646 = pneg %p151
        $region54: #{tpu_custom_call.1} parent=39 // pred_check_branch
          %1648 = sbr.rel (%p1646) target = $region56
        $region55: #{tpu_custom_call.1} parent=39 // pred_region
          %s1649 = smul.u32 16, %s23
          %1651 = vsyncadd %s1642, 0
          %s1652 = smul.addr %s1649, 8
          %s1653 = scalar_lea.hbm %s5, %s1652
          %s1654 = sshll.u32 %s1645, 4
          %s1655 = int_to_ptr.vmem [resolvable:$true] %s1654
          %s1656 = sshll.u32 %s1653, 4
          %s1657 = int_to_ptr.hbm [resolvable:$true] %s1656
          %1662 = dma.vmem_to_hbm [thread:$0]  %s1655, 2048, %s1657, %s1642, 128, 128, 8
        $region56: #{tpu_custom_call.1} parent=39 // pred_fallthru
          _
      $region40: #{tpu_custom_call.1} parent=5 // pred_fallthru
        _
      %p1663 = scmp.le.s32.totalorder 2, %s18
      // Predicated region
      $region57: #{tpu_custom_call.1} parent=5 // pred_check
        %p1664 = pneg %p1663
      $region58: #{tpu_custom_call.1} parent=5 // pred_check_branch
        %1666 = sbr.rel (%p1664) target = $region60
      $region59: #{tpu_custom_call.1} parent=5 // pred_region
        %s1667 = ssub.s32 %s18, 2
        // Predicated region
        $region61: #{tpu_custom_call.1} parent=59 // pred_check
          %p1668 = pneg %p157
        $region62: #{tpu_custom_call.1} parent=59 // pred_check_branch
          %1670 = sbr.rel (%p1668) target = $region64
        $region63: #{tpu_custom_call.1} parent=59 // pred_region
          %s1671 = sand.u32 %s142, 1
          %s1672 = scalar_lea.sflag [#allocation4], %s1671
          %s1673 = sand.u32 %s142, 1
          %s1674 = smul.addr %s1673, 128
          %s1675 = scalar_lea.vmem [#allocation8], %s1674
          %1677 = dma.done %s1672, 2048
        $region64: #{tpu_custom_call.1} parent=59 // pred_fallthru
          _
      $region60: #{tpu_custom_call.1} parent=5 // pred_fallthru
        _
    $region6: #{tpu_custom_call.1} parent=1 // loop_footer
      %s22 = sadd.s32 1, %s18
    $region7: #{tpu_custom_call.1} parent=1 // loop_footer_branch
      %17 = sbr.rel target = $region3
    $region8: #{tpu_custom_call.1} parent=1 // loop_exit
      _
    %1678 = vsyncpa [#allocation3], 1
    %s1679 = scalar_lea.sflag [#allocation3], 1
    %1680 = vsyncpa %s1679, 1
    %1681 = vsyncpa [#allocation6], 1
    %1682 = vsyncpa [#allocation4], 1
    %s1683 = scalar_lea.sflag [#allocation4], 1
    %1684 = vsyncpa %s1683, 1

</llo_original>
